<compile_context>
chip_gen: v7x
topology: tpu7x:2x2x1
jax: 0.10.0
libtpu: 0.0.40
codegen_flags: <defaults>
</compile_context>

<pallas_src>
import jax
import jax.numpy as jnp
from jax import lax
from jax.experimental import pallas as pl
from jax.experimental.pallas import tpu as pltpu


def basic_block_forward(x_nchw, w1, s1, b1, w2, s2, b2):
    """BasicBlock forward (stride=1, identity skip).

    x_nchw : (N, C, H, W) float32
    w1, w2 : (3, 3, Cin, Cout) HWIO conv weights
    s1, b1, s2, b2 : (Cout,) folded inference-BatchNorm scale / bias
    returns (N, Cout, H, W) float32
    """
    N, Cin, H, W = x_nchw.shape
    Cout = w1.shape[-1]
    assert Cin == Cout, "identity skip requires inplanes == planes"

    # Flattened padded-image geometry: the padded (Hp, Wp) image is a 1-D lane
    # axis of length P = Hp*Wp (row stride Wp) plus a margin of MARG = Wp+1 on
    # each side, so every 3x3 tap of the whole padded grid is one contiguous
    # lane slice of length P at static offset MARG + (kh-1)*Wp + (kw-1).
    Hp, Wp = H + 2, W + 2
    P = Hp * Wp
    MARG = Wp + 1
    L = P + 2 * MARG
    CPAD = 8                 # per-tap channel block padded to 8 sublanes (review #2)
    K = 9 * CPAD             # im2col contraction dim (zero rows where c >= Cin)

    # Images per grid step (review #3): largest divisor of N that is <= 8 while
    # keeping at least 2 grid steps (review #6: both v7x TensorCores get work).
    B = 1
    for cand in range(min(N, 8), 0, -1):
        if N % cand == 0 and N // cand >= 2:
            B = cand
            break
    G = N // B

    def kernel(x_ref, w1_ref, s1_ref, b1_ref, w2_ref, s2_ref, b2_ref,
               mask_ref, out_ref, mb_ref, cols_ref):
        # x_ref   : (B, Cin, L)     bf16  pre-padded, flattened images
        # w1_ref  : (Cout, K)       bf16  im2col weights (zero rows at K padding)
        # w2_ref  : (Cout, K)       bf16
        # s*/b*   : (Cout, 1)       f32   folded BN scale / bias
        # mask_ref: (1, P)          f32   1 on padded-grid interior, 0 on ring
        # out_ref : (B, Cout, P)    f32   padded-grid output (wrapper crops)
        # mb_ref  : (Cout, L)       bf16  padded, flattened conv1 output (reused per image)
        # cols_ref: (K, P)          bf16  im2col operand (reused by both convs / images)

        # Hoisted, once-per-step clears (review #5):
        #  * cols: guarantees the K-padding rows (never written by taps) are
        #    finite zeros; one wide clear is cheaper than 9 interleaved partial
        #    clears and is amortized over the B images of this step.
        #  * mb margins: never written by the body; keep them zero.
        # (Per-step, NOT gated on program_id==0: the batch axis is parallel, so
        #  each core only sees a subset of the grid.)
        cols_ref[...] = jnp.zeros_like(cols_ref)
        mb_ref[:, pl.ds(0, MARG)] = jnp.zeros((Cout, MARG), mb_ref.dtype)
        mb_ref[:, pl.ds(MARG + P, MARG)] = jnp.zeros((Cout, MARG), mb_ref.dtype)

        # Hoist all broadcast/constant reads out of the per-image loop.
        w1v, w2v = w1_ref[...], w2_ref[...]
        s1v, b1v = s1_ref[...], b1_ref[...]
        s2v, b2v = s2_ref[...], b2_ref[...]
        maskv = mask_ref[...]

        def conv3x3(src_ref, w, nrows):
            # im2col: fold the 9 taps into the contraction dim (bf16 -> bf16
            # copies, 8-row aligned destinations), then ONE native bf16 MXU
            # matmul (Cout, K) x (K, P) with f32 accumulation (review #1, #9).
            for t in range(9):
                kh, kw = divmod(t, 3)
                off = MARG + (kh - 1) * Wp + (kw - 1)
                cols_ref[pl.ds(t * CPAD, nrows), :] = src_ref[:, pl.ds(off, P)]
            return jnp.dot(w, cols_ref[...], preferred_element_type=jnp.float32)

        for b in range(B):                            # static unroll over the block
            xb = x_ref.at[b]                          # (Cin, L) bf16 view

            # ---- conv1 -> bn1 -> relu (over the whole padded grid) ----
            y1 = conv3x3(xb, w1v, Cin)                # (Cout, P) f32
            # mask zeroes the padded-grid ring so conv2 sees correct zero padding
            mid = jnp.maximum(y1 * s1v + b1v, 0.0) * maskv
            mb_ref[:, pl.ds(MARG, P)] = mid.astype(mb_ref.dtype)

            # ---- conv2 -> bn2 -> + identity -> relu ----
            y2 = conv3x3(mb_ref, w2v, Cout)           # (Cout, P) f32
            ident = xb[:, pl.ds(MARG, P)].astype(jnp.float32)
            z = jnp.maximum(y2 * s2v + b2v + ident, 0.0)
            out_ref[pl.ds(b, 1)] = z.reshape(1, Cout, P)

    # ---- wrapper-side (cheap, few-KB XLA) re-layouts ----
    # Pre-pad x into the flattened padded layout (review #4): spatial zero ring
    # + lane margins, stored bf16, so the kernel never scatters rows.
    x_p = x_nchw.astype(jnp.bfloat16)
    x_p = jnp.pad(x_p, ((0, 0), (0, 0), (1, 1), (1, 1)))        # (N, Cin, Hp, Wp)
    x_p = x_p.reshape(N, Cin, P)
    x_p = jnp.pad(x_p, ((0, 0), (0, 0), (MARG, MARG)))          # (N, Cin, L)

    def pack_w(w):
        # HWIO (3,3,Ci,Co) -> (9, Ci, Co) -> zero-pad channels to CPAD ->
        # (9*CPAD, Co) -> (Co, 9*CPAD), matching cols row order t*CPAD + c.
        ci, co = w.shape[2], w.shape[3]
        wr = w.reshape(9, ci, co)
        wr = jnp.pad(wr, ((0, 0), (0, CPAD - ci), (0, 0)))
        return wr.reshape(9 * CPAD, co).T.astype(jnp.bfloat16)

    w1m, w2m = pack_w(w1), pack_w(w2)
    s1c = s1.reshape(Cout, 1).astype(jnp.float32)
    b1c = b1.reshape(Cout, 1).astype(jnp.float32)
    s2c = s2.reshape(Cout, 1).astype(jnp.float32)
    b2c = b2.reshape(Cout, 1).astype(jnp.float32)
    mask = jnp.zeros((Hp, Wp), jnp.float32).at[1:H + 1, 1:W + 1].set(1.0)
    mask = mask.reshape(1, P)

    out_p = pl.pallas_call(
        kernel,
        out_shape=jax.ShapeDtypeStruct((N, Cout, P), jnp.float32),
        grid=(G,),
        in_specs=[
            pl.BlockSpec((B, Cin, L), lambda g: (g, 0, 0)),
            pl.BlockSpec((Cout, K), lambda g: (0, 0)),
            pl.BlockSpec((Cout, 1), lambda g: (0, 0)),
            pl.BlockSpec((Cout, 1), lambda g: (0, 0)),
            pl.BlockSpec((Cout, K), lambda g: (0, 0)),
            pl.BlockSpec((Cout, 1), lambda g: (0, 0)),
            pl.BlockSpec((Cout, 1), lambda g: (0, 0)),
            pl.BlockSpec((1, P), lambda g: (0, 0)),
        ],
        out_specs=pl.BlockSpec((B, Cout, P), lambda g: (g, 0, 0)),
        scratch_shapes=[
            pltpu.VMEM((Cout, L), jnp.bfloat16),     # padded flattened conv1 output
            pltpu.VMEM((K, P), jnp.bfloat16),        # im2col operand
        ],
        compiler_params=pltpu.CompilerParams(
            dimension_semantics=("parallel",)),      # v7x: split grid across TCs
    )(x_p, w1m, s1c, b1c, w2m, s2c, b2c, mask)

    # Crop the padded grid back to H x W; kernel already stored f32 so this is
    # the only post-kernel op (review #8: no separate bf16->f32 convert pass).
    return out_p.reshape(N, Cout, Hp, Wp)[:, :, 1:H + 1, 1:W + 1]


basic_block_forward = jax.jit(basic_block_forward)


def _reference_forward(x_nchw, w1, s1, b1, w2, s2, b2):
    """Pure-JAX reference mirroring the kernel's dtype policy (bf16 storage of
    x / weights / conv2-input, f32 compute and f32 output)."""
    f32 = jnp.float32
    xh = jnp.transpose(x_nchw, (0, 2, 3, 1)).astype(jnp.bfloat16).astype(f32)
    w1f = w1.astype(jnp.bfloat16).astype(f32)
    w2f = w2.astype(jnp.bfloat16).astype(f32)
    dn = lax.conv_dimension_numbers(xh.shape, w1f.shape, ("NHWC", "HWIO", "NHWC"))
    o = lax.conv_general_dilated(xh, w1f, (1, 1), "SAME", dimension_numbers=dn)
    o = jnp.maximum(o * s1 + b1, 0.0)
    o = o.astype(jnp.bfloat16).astype(f32)       # kernel feeds conv2 a bf16 operand
    o = lax.conv_general_dilated(o, w2f, (1, 1), "SAME", dimension_numbers=dn)
    o = jnp.maximum(o * s2 + b2 + xh, 0.0)
    return jnp.transpose(o, (0, 3, 1, 2))


if __name__ == "__main__":
    key = jax.random.PRNGKey(0)
    N, C, H, W = 2, 4, 16, 16          # inplanes = planes = 4, stride = 1
    planes = C

    ks = jax.random.split(key, 9)
    x = jax.random.normal(ks[0], (N, C, H, W), jnp.float32)

    # conv weights, HWIO layout
    w1 = 0.1 * jax.random.normal(ks[1], (3, 3, C, planes), jnp.float32)
    w2 = 0.1 * jax.random.normal(ks[2], (3, 3, planes, planes), jnp.float32)

    # BatchNorm (inference) parameters, folded into scale/bias
    eps = 1e-5
    g1 = 1.0 + 0.1 * jax.random.normal(ks[3], (planes,), jnp.float32)
    be1 = 0.1 * jax.random.normal(ks[4], (planes,), jnp.float32)
    m1 = 0.1 * jax.random.normal(ks[5], (planes,), jnp.float32)
    v1 = jnp.abs(jax.random.normal(ks[6], (planes,), jnp.float32)) + 0.5
    g2 = 1.0 + 0.1 * jax.random.normal(ks[7], (planes,), jnp.float32)
    be2 = 0.1 * jax.random.normal(ks[8], (planes,), jnp.float32)
    m2 = jnp.zeros((planes,), jnp.float32)
    v2 = jnp.ones((planes,), jnp.float32)

    s1 = g1 / jnp.sqrt(v1 + eps)
    b1 = be1 - m1 * s1
    s2 = g2 / jnp.sqrt(v2 + eps)
    b2 = be2 - m2 * s2

    out = basic_block_forward(x, w1, s1, b1, w2, s2, b2)
    out = jax.block_until_ready(out)

    ref = _reference_forward(x, w1, s1, b1, w2, s2, b2)
    assert out.shape == (N, planes, H, W)
    max_err = float(jnp.max(jnp.abs(out - ref)))
    assert jnp.allclose(out, ref, atol=2e-2, rtol=2e-2), (
        f"mismatch vs reference, max abs err = {max_err}")

    print("KERNEL_OK")
</pallas_src>

<mosaic_0001>
module attributes {stable_mosaic.version = 11 : i64} {
  func.func @kernel(%arg0: i32, %arg1: memref<1x4x362xbf16, #tpu.memory_space<vmem>>, %arg2: memref<4x72xbf16, #tpu.memory_space<vmem>>, %arg3: memref<4x1xf32, #tpu.memory_space<vmem>>, %arg4: memref<4x1xf32, #tpu.memory_space<vmem>>, %arg5: memref<4x72xbf16, #tpu.memory_space<vmem>>, %arg6: memref<4x1xf32, #tpu.memory_space<vmem>>, %arg7: memref<4x1xf32, #tpu.memory_space<vmem>>, %arg8: memref<1x324xf32, #tpu.memory_space<vmem>>, %arg9: memref<1x4x324xf32, #tpu.memory_space<vmem>>, %arg10: memref<4x362xbf16, #tpu.memory_space<vmem>>, %arg11: memref<72x324xbf16, #tpu.memory_space<vmem>>) attributes {dimension_semantics = [#tpu.dimension_semantics<parallel>], iteration_bounds = array<i64: 2>, scalar_prefetch = 0 : i64, scratch_operands = 2 : i64, tpu.core_type = #tpu.core_type<tc>, window_params = [{transform_indices = @transform_0, window_bounds = array<i64: 1, 4, 362>}, {pipeline_mode = #tpu.pipeline_mode<synchronous>, transform_indices = @transform_1, window_bounds = array<i64: 4, 72>}, {pipeline_mode = #tpu.pipeline_mode<synchronous>, transform_indices = @transform_2, window_bounds = array<i64: 4, 1>}, {pipeline_mode = #tpu.pipeline_mode<synchronous>, transform_indices = @transform_3, window_bounds = array<i64: 4, 1>}, {pipeline_mode = #tpu.pipeline_mode<synchronous>, transform_indices = @transform_4, window_bounds = array<i64: 4, 72>}, {pipeline_mode = #tpu.pipeline_mode<synchronous>, transform_indices = @transform_5, window_bounds = array<i64: 4, 1>}, {pipeline_mode = #tpu.pipeline_mode<synchronous>, transform_indices = @transform_6, window_bounds = array<i64: 4, 1>}, {pipeline_mode = #tpu.pipeline_mode<synchronous>, transform_indices = @transform_7, window_bounds = array<i64: 1, 324>}, {transform_indices = @transform_8, window_bounds = array<i64: 1, 4, 324>}]} {
    %cst = arith.constant 0.000000e+00 : bf16
    %0 = vector.broadcast %cst : bf16 to vector<72x324xbf16>
    %c0 = arith.constant 0 : index
    %c0_0 = arith.constant 0 : index
    %1 = vector.load %arg11[%c0, %c0_0] : memref<72x324xbf16, #tpu.memory_space<vmem>>, vector<72x324xbf16>
    tpu.vector_store %arg11[%c0, %c0_0], %0 {strides = array<i32>} : memref<72x324xbf16, #tpu.memory_space<vmem>>, vector<72x324xbf16>,
    %cst_1 = arith.constant 0.000000e+00 : bf16
    %2 = vector.broadcast %cst_1 : bf16 to vector<4x19xbf16>
    %c0_2 = arith.constant 0 : index
    %c0_3 = arith.constant 0 : index
    %3 = vector.load %arg10[%c0_2, %c0_3] : memref<4x362xbf16, #tpu.memory_space<vmem>>, vector<4x19xbf16>
    tpu.vector_store %arg10[%c0_2, %c0_3], %2 {strides = array<i32>} : memref<4x362xbf16, #tpu.memory_space<vmem>>, vector<4x19xbf16>,
    %cst_4 = arith.constant 0.000000e+00 : bf16
    %4 = vector.broadcast %cst_4 : bf16 to vector<4x19xbf16>
    %c0_5 = arith.constant 0 : index
    %c343 = arith.constant 343 : index
    %5 = vector.load %arg10[%c0_5, %c343] : memref<4x362xbf16, #tpu.memory_space<vmem>>, vector<4x19xbf16>
    tpu.vector_store %arg10[%c0_5, %c343], %4 {strides = array<i32>} : memref<4x362xbf16, #tpu.memory_space<vmem>>, vector<4x19xbf16>,
    %c0_6 = arith.constant 0 : index
    %c0_7 = arith.constant 0 : index
    %6 = vector.load %arg2[%c0_6, %c0_7] : memref<4x72xbf16, #tpu.memory_space<vmem>>, vector<4x72xbf16>
    %c0_8 = arith.constant 0 : index
    %c0_9 = arith.constant 0 : index
    %7 = vector.load %arg5[%c0_8, %c0_9] : memref<4x72xbf16, #tpu.memory_space<vmem>>, vector<4x72xbf16>
    %c0_10 = arith.constant 0 : index
    %c0_11 = arith.constant 0 : index
    %8 = vector.load %arg3[%c0_10, %c0_11] : memref<4x1xf32, #tpu.memory_space<vmem>>, vector<4x1xf32>
    %c0_12 = arith.constant 0 : index
    %c0_13 = arith.constant 0 : index
    %9 = vector.load %arg4[%c0_12, %c0_13] : memref<4x1xf32, #tpu.memory_space<vmem>>, vector<4x1xf32>
    %c0_14 = arith.constant 0 : index
    %c0_15 = arith.constant 0 : index
    %10 = vector.load %arg6[%c0_14, %c0_15] : memref<4x1xf32, #tpu.memory_space<vmem>>, vector<4x1xf32>
    %c0_16 = arith.constant 0 : index
    %c0_17 = arith.constant 0 : index
    %11 = vector.load %arg7[%c0_16, %c0_17] : memref<4x1xf32, #tpu.memory_space<vmem>>, vector<4x1xf32>
    %c0_18 = arith.constant 0 : index
    %c0_19 = arith.constant 0 : index
    %12 = vector.load %arg8[%c0_18, %c0_19] : memref<1x324xf32, #tpu.memory_space<vmem>>, vector<1x324xf32>
    %c0_i32 = arith.constant 0 : i32
    %c0_i32_20 = arith.constant 0 : i32
    %c0_i32_21 = arith.constant 0 : i32
    %13 = tpu.memref_slice %arg1[%c0_i32, %c0_i32_20, %c0_i32_21] : memref<1x4x362xbf16, #tpu.memory_space<vmem>> -> memref<1x4x362xbf16, #tpu.memory_space<vmem>>
    %14 = tpu.memref_squeeze %13 : memref<1x4x362xbf16, #tpu.memory_space<vmem>> -> memref<4x362xbf16, #tpu.memory_space<vmem>>
    %c0_22 = arith.constant 0 : index
    %c0_23 = arith.constant 0 : index
    %15 = vector.load %14[%c0_22, %c0_23] : memref<4x362xbf16, #tpu.memory_space<vmem>>, vector<4x324xbf16>
    %c0_24 = arith.constant 0 : index
    %c0_25 = arith.constant 0 : index
    %16 = vector.load %arg11[%c0_24, %c0_25] : memref<72x324xbf16, #tpu.memory_space<vmem>>, vector<4x324xbf16>
    tpu.vector_store %arg11[%c0_24, %c0_25], %15 {strides = array<i32>} : memref<72x324xbf16, #tpu.memory_space<vmem>>, vector<4x324xbf16>,
    %c0_i32_26 = arith.constant 0 : i32
    %c0_i32_27 = arith.constant 0 : i32
    %c0_i32_28 = arith.constant 0 : i32
    %17 = tpu.memref_slice %arg1[%c0_i32_26, %c0_i32_27, %c0_i32_28] : memref<1x4x362xbf16, #tpu.memory_space<vmem>> -> memref<1x4x362xbf16, #tpu.memory_space<vmem>>
    %18 = tpu.memref_squeeze %17 : memref<1x4x362xbf16, #tpu.memory_space<vmem>> -> memref<4x362xbf16, #tpu.memory_space<vmem>>
    %c0_29 = arith.constant 0 : index
    %c1 = arith.constant 1 : index
    %19 = vector.load %18[%c0_29, %c1] : memref<4x362xbf16, #tpu.memory_space<vmem>>, vector<4x324xbf16>
    %c8 = arith.constant 8 : index
    %c0_30 = arith.constant 0 : index
    %20 = vector.load %arg11[%c8, %c0_30] : memref<72x324xbf16, #tpu.memory_space<vmem>>, vector<4x324xbf16>
    tpu.vector_store %arg11[%c8, %c0_30], %19 {strides = array<i32>} : memref<72x324xbf16, #tpu.memory_space<vmem>>, vector<4x324xbf16>,
    %c0_i32_31 = arith.constant 0 : i32
    %c0_i32_32 = arith.constant 0 : i32
    %c0_i32_33 = arith.constant 0 : i32
    %21 = tpu.memref_slice %arg1[%c0_i32_31, %c0_i32_32, %c0_i32_33] : memref<1x4x362xbf16, #tpu.memory_space<vmem>> -> memref<1x4x362xbf16, #tpu.memory_space<vmem>>
    %22 = tpu.memref_squeeze %21 : memref<1x4x362xbf16, #tpu.memory_space<vmem>> -> memref<4x362xbf16, #tpu.memory_space<vmem>>
    %c0_34 = arith.constant 0 : index
    %c2 = arith.constant 2 : index
    %23 = vector.load %22[%c0_34, %c2] : memref<4x362xbf16, #tpu.memory_space<vmem>>, vector<4x324xbf16>
    %c16 = arith.constant 16 : index
    %c0_35 = arith.constant 0 : index
    %24 = vector.load %arg11[%c16, %c0_35] : memref<72x324xbf16, #tpu.memory_space<vmem>>, vector<4x324xbf16>
    tpu.vector_store %arg11[%c16, %c0_35], %23 {strides = array<i32>} : memref<72x324xbf16, #tpu.memory_space<vmem>>, vector<4x324xbf16>,
    %c0_i32_36 = arith.constant 0 : i32
    %c0_i32_37 = arith.constant 0 : i32
    %c0_i32_38 = arith.constant 0 : i32
    %25 = tpu.memref_slice %arg1[%c0_i32_36, %c0_i32_37, %c0_i32_38] : memref<1x4x362xbf16, #tpu.memory_space<vmem>> -> memref<1x4x362xbf16, #tpu.memory_space<vmem>>
    %26 = tpu.memref_squeeze %25 : memref<1x4x362xbf16, #tpu.memory_space<vmem>> -> memref<4x362xbf16, #tpu.memory_space<vmem>>
    %c0_39 = arith.constant 0 : index
    %c18 = arith.constant 18 : index
    %27 = vector.load %26[%c0_39, %c18] : memref<4x362xbf16, #tpu.memory_space<vmem>>, vector<4x324xbf16>
    %c24 = arith.constant 24 : index
    %c0_40 = arith.constant 0 : index
    %28 = vector.load %arg11[%c24, %c0_40] : memref<72x324xbf16, #tpu.memory_space<vmem>>, vector<4x324xbf16>
    tpu.vector_store %arg11[%c24, %c0_40], %27 {strides = array<i32>} : memref<72x324xbf16, #tpu.memory_space<vmem>>, vector<4x324xbf16>,
    %c0_i32_41 = arith.constant 0 : i32
    %c0_i32_42 = arith.constant 0 : i32
    %c0_i32_43 = arith.constant 0 : i32
    %29 = tpu.memref_slice %arg1[%c0_i32_41, %c0_i32_42, %c0_i32_43] : memref<1x4x362xbf16, #tpu.memory_space<vmem>> -> memref<1x4x362xbf16, #tpu.memory_space<vmem>>
    %30 = tpu.memref_squeeze %29 : memref<1x4x362xbf16, #tpu.memory_space<vmem>> -> memref<4x362xbf16, #tpu.memory_space<vmem>>
    %c0_44 = arith.constant 0 : index
    %c19 = arith.constant 19 : index
    %31 = vector.load %30[%c0_44, %c19] : memref<4x362xbf16, #tpu.memory_space<vmem>>, vector<4x324xbf16>
    %c32 = arith.constant 32 : index
    %c0_45 = arith.constant 0 : index
    %32 = vector.load %arg11[%c32, %c0_45] : memref<72x324xbf16, #tpu.memory_space<vmem>>, vector<4x324xbf16>
    tpu.vector_store %arg11[%c32, %c0_45], %31 {strides = array<i32>} : memref<72x324xbf16, #tpu.memory_space<vmem>>, vector<4x324xbf16>,
    %c0_i32_46 = arith.constant 0 : i32
    %c0_i32_47 = arith.constant 0 : i32
    %c0_i32_48 = arith.constant 0 : i32
    %33 = tpu.memref_slice %arg1[%c0_i32_46, %c0_i32_47, %c0_i32_48] : memref<1x4x362xbf16, #tpu.memory_space<vmem>> -> memref<1x4x362xbf16, #tpu.memory_space<vmem>>
    %34 = tpu.memref_squeeze %33 : memref<1x4x362xbf16, #tpu.memory_space<vmem>> -> memref<4x362xbf16, #tpu.memory_space<vmem>>
    %c0_49 = arith.constant 0 : index
    %c20 = arith.constant 20 : index
    %35 = vector.load %34[%c0_49, %c20] : memref<4x362xbf16, #tpu.memory_space<vmem>>, vector<4x324xbf16>
    %c40 = arith.constant 40 : index
    %c0_50 = arith.constant 0 : index
    %36 = vector.load %arg11[%c40, %c0_50] : memref<72x324xbf16, #tpu.memory_space<vmem>>, vector<4x324xbf16>
    tpu.vector_store %arg11[%c40, %c0_50], %35 {strides = array<i32>} : memref<72x324xbf16, #tpu.memory_space<vmem>>, vector<4x324xbf16>,
    %c0_i32_51 = arith.constant 0 : i32
    %c0_i32_52 = arith.constant 0 : i32
    %c0_i32_53 = arith.constant 0 : i32
    %37 = tpu.memref_slice %arg1[%c0_i32_51, %c0_i32_52, %c0_i32_53] : memref<1x4x362xbf16, #tpu.memory_space<vmem>> -> memref<1x4x362xbf16, #tpu.memory_space<vmem>>
    %38 = tpu.memref_squeeze %37 : memref<1x4x362xbf16, #tpu.memory_space<vmem>> -> memref<4x362xbf16, #tpu.memory_space<vmem>>
    %c0_54 = arith.constant 0 : index
    %c36 = arith.constant 36 : index
    %39 = vector.load %38[%c0_54, %c36] : memref<4x362xbf16, #tpu.memory_space<vmem>>, vector<4x324xbf16>
    %c48 = arith.constant 48 : index
    %c0_55 = arith.constant 0 : index
    %40 = vector.load %arg11[%c48, %c0_55] : memref<72x324xbf16, #tpu.memory_space<vmem>>, vector<4x324xbf16>
    tpu.vector_store %arg11[%c48, %c0_55], %39 {strides = array<i32>} : memref<72x324xbf16, #tpu.memory_space<vmem>>, vector<4x324xbf16>,
    %c0_i32_56 = arith.constant 0 : i32
    %c0_i32_57 = arith.constant 0 : i32
    %c0_i32_58 = arith.constant 0 : i32
    %41 = tpu.memref_slice %arg1[%c0_i32_56, %c0_i32_57, %c0_i32_58] : memref<1x4x362xbf16, #tpu.memory_space<vmem>> -> memref<1x4x362xbf16, #tpu.memory_space<vmem>>
    %42 = tpu.memref_squeeze %41 : memref<1x4x362xbf16, #tpu.memory_space<vmem>> -> memref<4x362xbf16, #tpu.memory_space<vmem>>
    %c0_59 = arith.constant 0 : index
    %c37 = arith.constant 37 : index
    %43 = vector.load %42[%c0_59, %c37] : memref<4x362xbf16, #tpu.memory_space<vmem>>, vector<4x324xbf16>
    %c56 = arith.constant 56 : index
    %c0_60 = arith.constant 0 : index
    %44 = vector.load %arg11[%c56, %c0_60] : memref<72x324xbf16, #tpu.memory_space<vmem>>, vector<4x324xbf16>
    tpu.vector_store %arg11[%c56, %c0_60], %43 {strides = array<i32>} : memref<72x324xbf16, #tpu.memory_space<vmem>>, vector<4x324xbf16>,
    %c0_i32_61 = arith.constant 0 : i32
    %c0_i32_62 = arith.constant 0 : i32
    %c0_i32_63 = arith.constant 0 : i32
    %45 = tpu.memref_slice %arg1[%c0_i32_61, %c0_i32_62, %c0_i32_63] : memref<1x4x362xbf16, #tpu.memory_space<vmem>> -> memref<1x4x362xbf16, #tpu.memory_space<vmem>>
    %46 = tpu.memref_squeeze %45 : memref<1x4x362xbf16, #tpu.memory_space<vmem>> -> memref<4x362xbf16, #tpu.memory_space<vmem>>
    %c0_64 = arith.constant 0 : index
    %c38 = arith.constant 38 : index
    %47 = vector.load %46[%c0_64, %c38] : memref<4x362xbf16, #tpu.memory_space<vmem>>, vector<4x324xbf16>
    %c64 = arith.constant 64 : index
    %c0_65 = arith.constant 0 : index
    %48 = vector.load %arg11[%c64, %c0_65] : memref<72x324xbf16, #tpu.memory_space<vmem>>, vector<4x324xbf16>
    tpu.vector_store %arg11[%c64, %c0_65], %47 {strides = array<i32>} : memref<72x324xbf16, #tpu.memory_space<vmem>>, vector<4x324xbf16>,
    %c0_66 = arith.constant 0 : index
    %c0_67 = arith.constant 0 : index
    %49 = vector.load %arg11[%c0_66, %c0_67] : memref<72x324xbf16, #tpu.memory_space<vmem>>, vector<72x324xbf16>
    %cst_68 = arith.constant dense<0.000000e+00> : vector<4x324xf32>
    %50 = tpu.matmul %6, %49, %cst_68 {dimension_numbers = #tpu.dot_dimension_numbers<[1], [0], [0], [1], [0, 0, 1, 1], [], []>} : vector<4x72xbf16>, vector<72x324xbf16>, vector<4x324xf32> -> vector<4x324xf32>
    %51 = vector.broadcast %8 : vector<4x1xf32> to vector<4x324xf32>
    %52 = arith.mulf %50, %51 : vector<4x324xf32>
    %53 = vector.broadcast %9 : vector<4x1xf32> to vector<4x324xf32>
    %54 = arith.addf %52, %53 : vector<4x324xf32>
    %cst_69 = arith.constant 0.000000e+00 : f32
    %55 = vector.broadcast %cst_69 : f32 to vector<4x324xf32>
    %56 = arith.maximumf %54, %55 : vector<4x324xf32>
    %57 = vector.broadcast %12 : vector<1x324xf32> to vector<4x324xf32>
    %58 = arith.mulf %56, %57 : vector<4x324xf32>
    %59 = arith.truncf %58 : vector<4x324xf32> to vector<4x324xbf16>
    %c0_70 = arith.constant 0 : index
    %c19_71 = arith.constant 19 : index
    %60 = vector.load %arg10[%c0_70, %c19_71] : memref<4x362xbf16, #tpu.memory_space<vmem>>, vector<4x324xbf16>
    tpu.vector_store %arg10[%c0_70, %c19_71], %59 {strides = array<i32>} : memref<4x362xbf16, #tpu.memory_space<vmem>>, vector<4x324xbf16>,
    %c0_72 = arith.constant 0 : index
    %c0_73 = arith.constant 0 : index
    %61 = vector.load %arg10[%c0_72, %c0_73] : memref<4x362xbf16, #tpu.memory_space<vmem>>, vector<4x324xbf16>
    %c0_74 = arith.constant 0 : index
    %c0_75 = arith.constant 0 : index
    %62 = vector.load %arg11[%c0_74, %c0_75] : memref<72x324xbf16, #tpu.memory_space<vmem>>, vector<4x324xbf16>
    tpu.vector_store %arg11[%c0_74, %c0_75], %61 {strides = array<i32>} : memref<72x324xbf16, #tpu.memory_space<vmem>>, vector<4x324xbf16>,
    %c0_76 = arith.constant 0 : index
    %c1_77 = arith.constant 1 : index
    %63 = vector.load %arg10[%c0_76, %c1_77] : memref<4x362xbf16, #tpu.memory_space<vmem>>, vector<4x324xbf16>
    %c8_78 = arith.constant 8 : index
    %c0_79 = arith.constant 0 : index
    %64 = vector.load %arg11[%c8_78, %c0_79] : memref<72x324xbf16, #tpu.memory_space<vmem>>, vector<4x324xbf16>
    tpu.vector_store %arg11[%c8_78, %c0_79], %63 {strides = array<i32>} : memref<72x324xbf16, #tpu.memory_space<vmem>>, vector<4x324xbf16>,
    %c0_80 = arith.constant 0 : index
    %c2_81 = arith.constant 2 : index
    %65 = vector.load %arg10[%c0_80, %c2_81] : memref<4x362xbf16, #tpu.memory_space<vmem>>, vector<4x324xbf16>
    %c16_82 = arith.constant 16 : index
    %c0_83 = arith.constant 0 : index
    %66 = vector.load %arg11[%c16_82, %c0_83] : memref<72x324xbf16, #tpu.memory_space<vmem>>, vector<4x324xbf16>
    tpu.vector_store %arg11[%c16_82, %c0_83], %65 {strides = array<i32>} : memref<72x324xbf16, #tpu.memory_space<vmem>>, vector<4x324xbf16>,
    %c0_84 = arith.constant 0 : index
    %c18_85 = arith.constant 18 : index
    %67 = vector.load %arg10[%c0_84, %c18_85] : memref<4x362xbf16, #tpu.memory_space<vmem>>, vector<4x324xbf16>
    %c24_86 = arith.constant 24 : index
    %c0_87 = arith.constant 0 : index
    %68 = vector.load %arg11[%c24_86, %c0_87] : memref<72x324xbf16, #tpu.memory_space<vmem>>, vector<4x324xbf16>
    tpu.vector_store %arg11[%c24_86, %c0_87], %67 {strides = array<i32>} : memref<72x324xbf16, #tpu.memory_space<vmem>>, vector<4x324xbf16>,
    %c0_88 = arith.constant 0 : index
    %c19_89 = arith.constant 19 : index
    %69 = vector.load %arg10[%c0_88, %c19_89] : memref<4x362xbf16, #tpu.memory_space<vmem>>, vector<4x324xbf16>
    %c32_90 = arith.constant 32 : index
    %c0_91 = arith.constant 0 : index
    %70 = vector.load %arg11[%c32_90, %c0_91] : memref<72x324xbf16, #tpu.memory_space<vmem>>, vector<4x324xbf16>
    tpu.vector_store %arg11[%c32_90, %c0_91], %69 {strides = array<i32>} : memref<72x324xbf16, #tpu.memory_space<vmem>>, vector<4x324xbf16>,
    %c0_92 = arith.constant 0 : index
    %c20_93 = arith.constant 20 : index
    %71 = vector.load %arg10[%c0_92, %c20_93] : memref<4x362xbf16, #tpu.memory_space<vmem>>, vector<4x324xbf16>
    %c40_94 = arith.constant 40 : index
    %c0_95 = arith.constant 0 : index
    %72 = vector.load %arg11[%c40_94, %c0_95] : memref<72x324xbf16, #tpu.memory_space<vmem>>, vector<4x324xbf16>
    tpu.vector_store %arg11[%c40_94, %c0_95], %71 {strides = array<i32>} : memref<72x324xbf16, #tpu.memory_space<vmem>>, vector<4x324xbf16>,
    %c0_96 = arith.constant 0 : index
    %c36_97 = arith.constant 36 : index
    %73 = vector.load %arg10[%c0_96, %c36_97] : memref<4x362xbf16, #tpu.memory_space<vmem>>, vector<4x324xbf16>
    %c48_98 = arith.constant 48 : index
    %c0_99 = arith.constant 0 : index
    %74 = vector.load %arg11[%c48_98, %c0_99] : memref<72x324xbf16, #tpu.memory_space<vmem>>, vector<4x324xbf16>
    tpu.vector_store %arg11[%c48_98, %c0_99], %73 {strides = array<i32>} : memref<72x324xbf16, #tpu.memory_space<vmem>>, vector<4x324xbf16>,
    %c0_100 = arith.constant 0 : index
    %c37_101 = arith.constant 37 : index
    %75 = vector.load %arg10[%c0_100, %c37_101] : memref<4x362xbf16, #tpu.memory_space<vmem>>, vector<4x324xbf16>
    %c56_102 = arith.constant 56 : index
    %c0_103 = arith.constant 0 : index
    %76 = vector.load %arg11[%c56_102, %c0_103] : memref<72x324xbf16, #tpu.memory_space<vmem>>, vector<4x324xbf16>
    tpu.vector_store %arg11[%c56_102, %c0_103], %75 {strides = array<i32>} : memref<72x324xbf16, #tpu.memory_space<vmem>>, vector<4x324xbf16>,
    %c0_104 = arith.constant 0 : index
    %c38_105 = arith.constant 38 : index
    %77 = vector.load %arg10[%c0_104, %c38_105] : memref<4x362xbf16, #tpu.memory_space<vmem>>, vector<4x324xbf16>
    %c64_106 = arith.constant 64 : index
    %c0_107 = arith.constant 0 : index
    %78 = vector.load %arg11[%c64_106, %c0_107] : memref<72x324xbf16, #tpu.memory_space<vmem>>, vector<4x324xbf16>
    tpu.vector_store %arg11[%c64_106, %c0_107], %77 {strides = array<i32>} : memref<72x324xbf16, #tpu.memory_space<vmem>>, vector<4x324xbf16>,
    %c0_108 = arith.constant 0 : index
    %c0_109 = arith.constant 0 : index
    %79 = vector.load %arg11[%c0_108, %c0_109] : memref<72x324xbf16, #tpu.memory_space<vmem>>, vector<72x324xbf16>
    %cst_110 = arith.constant dense<0.000000e+00> : vector<4x324xf32>
    %80 = tpu.matmul %7, %79, %cst_110 {dimension_numbers = #tpu.dot_dimension_numbers<[1], [0], [0], [1], [0, 0, 1, 1], [], []>} : vector<4x72xbf16>, vector<72x324xbf16>, vector<4x324xf32> -> vector<4x324xf32>
    %c0_i32_111 = arith.constant 0 : i32
    %c0_i32_112 = arith.constant 0 : i32
    %c0_i32_113 = arith.constant 0 : i32
    %81 = tpu.memref_slice %arg1[%c0_i32_111, %c0_i32_112, %c0_i32_113] : memref<1x4x362xbf16, #tpu.memory_space<vmem>> -> memref<1x4x362xbf16, #tpu.memory_space<vmem>>
    %82 = tpu.memref_squeeze %81 : memref<1x4x362xbf16, #tpu.memory_space<vmem>> -> memref<4x362xbf16, #tpu.memory_space<vmem>>
    %c0_114 = arith.constant 0 : index
    %c19_115 = arith.constant 19 : index
    %83 = vector.load %82[%c0_114, %c19_115] : memref<4x362xbf16, #tpu.memory_space<vmem>>, vector<4x324xbf16>
    %84 = arith.extf %83 : vector<4x324xbf16> to vector<4x324xf32>
    %85 = vector.broadcast %10 : vector<4x1xf32> to vector<4x324xf32>
    %86 = arith.mulf %80, %85 : vector<4x324xf32>
    %87 = vector.broadcast %11 : vector<4x1xf32> to vector<4x324xf32>
    %88 = arith.addf %86, %87 : vector<4x324xf32>
    %89 = arith.addf %88, %84 : vector<4x324xf32>
    %cst_116 = arith.constant 0.000000e+00 : f32
    %90 = vector.broadcast %cst_116 : f32 to vector<4x324xf32>
    %91 = arith.maximumf %89, %90 : vector<4x324xf32>
    %92 = vector.shape_cast %91 : vector<4x324xf32> to vector<1x4x324xf32>
    %c0_117 = arith.constant 0 : index
    %c0_118 = arith.constant 0 : index
    %c0_119 = arith.constant 0 : index
    %93 = vector.load %arg9[%c0_117, %c0_118, %c0_119] : memref<1x4x324xf32, #tpu.memory_space<vmem>>, vector<1x4x324xf32>
    tpu.vector_store %arg9[%c0_117, %c0_118, %c0_119], %92 {strides = array<i32>} : memref<1x4x324xf32, #tpu.memory_space<vmem>>, vector<1x4x324xf32>,
    return
  }
  func.func @transform_0(%arg0: i32) -> (i32, i32, i32) {
    %c0_i32 = arith.constant 0 : i32
    %c0_i32_0 = arith.constant 0 : i32
    %c0_i32_1 = arith.constant 0 : i32
    return %arg0, %c0_i32, %c0_i32_0 : i32, i32, i32
  }
  func.func @transform_1(%arg0: i32) -> (i32, i32) {
    %c0_i32 = arith.constant 0 : i32
    %c0_i32_0 = arith.constant 0 : i32
    %c0_i32_1 = arith.constant 0 : i32
    return %c0_i32, %c0_i32_0 : i32, i32
  }
  func.func @transform_2(%arg0: i32) -> (i32, i32) {
    %c0_i32 = arith.constant 0 : i32
    %c0_i32_0 = arith.constant 0 : i32
    %c0_i32_1 = arith.constant 0 : i32
    return %c0_i32, %c0_i32_0 : i32, i32
  }
  func.func @transform_3(%arg0: i32) -> (i32, i32) {
    %c0_i32 = arith.constant 0 : i32
    %c0_i32_0 = arith.constant 0 : i32
    %c0_i32_1 = arith.constant 0 : i32
    return %c0_i32, %c0_i32_0 : i32, i32
  }
  func.func @transform_4(%arg0: i32) -> (i32, i32) {
    %c0_i32 = arith.constant 0 : i32
    %c0_i32_0 = arith.constant 0 : i32
    %c0_i32_1 = arith.constant 0 : i32
    return %c0_i32, %c0_i32_0 : i32, i32
  }
  func.func @transform_5(%arg0: i32) -> (i32, i32) {
    %c0_i32 = arith.constant 0 : i32
    %c0_i32_0 = arith.constant 0 : i32
    %c0_i32_1 = arith.constant 0 : i32
    return %c0_i32, %c0_i32_0 : i32, i32
  }
  func.func @transform_6(%arg0: i32) -> (i32, i32) {
    %c0_i32 = arith.constant 0 : i32
    %c0_i32_0 = arith.constant 0 : i32
    %c0_i32_1 = arith.constant 0 : i32
    return %c0_i32, %c0_i32_0 : i32, i32
  }
  func.func @transform_7(%arg0: i32) -> (i32, i32) {
    %c0_i32 = arith.constant 0 : i32
    %c0_i32_0 = arith.constant 0 : i32
    %c0_i32_1 = arith.constant 0 : i32
    return %c0_i32, %c0_i32_0 : i32, i32
  }
  func.func @transform_8(%arg0: i32) -> (i32, i32, i32) {
    %c0_i32 = arith.constant 0 : i32
    %c0_i32_0 = arith.constant 0 : i32
    %c0_i32_1 = arith.constant 0 : i32
    return %arg0, %c0_i32, %c0_i32_0 : i32, i32, i32
  }
}

</mosaic_0001>

<llo_original>
// kernel: basic_block_forward.1
$region0: #{basic_block_forward.1}
  #allocation0 [shape = 'u32[]', space=smem, size = 0x4, offset = 0x4, fixed_abs, tag = 'smem constant byte address 0x4 - core index']
  #allocation1 [shape = 'u32[144,128]{1,0:T(1,128)}', space=vmem, size = 0x12000, scoped, tag = 'internal scratch']
  #allocation2 [shape = 'bf16[4,362]{1,0:T(4,128)(2,1)}', space=vmem, size = 0xc00, scoped, tag = 'scratch operand']
  #allocation3 [shape = 'bf16[72,324]{1,0:T(8,128)(2,1)}', space=vmem, size = 0xd800, scoped, tag = 'scratch operand']
  %s0 = inlined_call_operand.vmem [shape: bf16[2,4,362], index: 0, kind: input, shape index: {}]
  %s1 = inlined_call_operand.vmem [shape: bf16[4,72], index: 1, kind: input, shape index: {}]
  %s2 = inlined_call_operand.vmem [shape: f32[4,1], index: 2, kind: input, shape index: {}]
  %s3 = inlined_call_operand.vmem [shape: f32[4,1], index: 3, kind: input, shape index: {}]
  %s4 = inlined_call_operand.vmem [shape: bf16[4,72], index: 4, kind: input, shape index: {}]
  %s5 = inlined_call_operand.vmem [shape: f32[4,1], index: 5, kind: input, shape index: {}]
  %s6 = inlined_call_operand.vmem [shape: f32[4,1], index: 6, kind: input, shape index: {}]
  %s7 = inlined_call_operand.vmem [shape: f32[1,324], index: 7, kind: input, shape index: {}]
  %s8 = inlined_call_operand.vmem [shape: f32[2,4,324], index: 8, kind: output, shape index: {}]
  %s9 = sld [smem:[#allocation0]]
  $region65: #{basic_block_forward.1} parent=0
    _
  %s11 = ssub.s32 1, %s9
  %s12 = scalar_select 0, %s11, %s9
  loop: start=0, step=1, limit=4
  $region2: #{basic_block_forward.1} parent=0 // loop_pre_header
    _
  $region3: #{basic_block_forward.1} parent=0 // loop_header
    %s14 = sphi 0, %s18
    %p15 = scmp.ge.s32.totalorder %s14, 4
    %s24 = sphi 0, %s26
    %s27 = sphi 0, %s24
    %s28 = sphi 0, %s27
    %s44 = sphi 0, %s28
    %s48 = sphi 0, %s48
    %s50 = sphi 0, %s48
    %s51 = sphi 0, %s50
    %s65 = sphi 0, %s51
    %s69 = sphi 0, %s69
    %s71 = sphi 0, %s69
    %s72 = sphi 0, %s71
    %s86 = sphi 0, %s72
    %s90 = sphi 0, %s90
    %s92 = sphi 0, %s90
    %s93 = sphi 0, %s92
    %s107 = sphi 0, %s93
    %s111 = sphi 0, %s111
    %s113 = sphi 0, %s111
    %s114 = sphi 0, %s113
    %s128 = sphi 0, %s114
    %s132 = sphi 0, %s132
    %s134 = sphi 0, %s132
    %s135 = sphi 0, %s134
    %s149 = sphi 0, %s135
    %s153 = sphi 0, %s153
    %s155 = sphi 0, %s153
    %s156 = sphi 0, %s155
    %s170 = sphi 0, %s156
    %s174 = sphi 0, %s174
    %s176 = sphi 0, %s174
    %s177 = sphi 0, %s176
    %s191 = sphi 0, %s177
    %s197 = sphi 0, %s199
    %s200 = sphi 0, %s197
    %s201 = sphi 0, %s200
    %s217 = sphi 0, %s201
  $region4: #{basic_block_forward.1} parent=0 // loop_header_branch
    %17 = sbr.rel (%p15) target = $region8
  $region5: #{basic_block_forward.1} parent=0 // loop_body
    %s19 = ssub.s32 %s14, 1
    %s20 = ssub.s32 %s14, 2
    %s21 = sadd.s32 %s14, 1
    %s22 = ssub.s32 %s14, %s21
    %p23 = scmp.eq.s32.totalorder %s22, 0
    %s25 = sadd.s32 %s24, 1
    %s26 = scalar_select %p23, %s24, %s25
    %p29 = pneg %p23
    %p30 = scmp.eq.s32.totalorder %s14, 1
    %p31 = por %p29, %p30
    %p32 = scmp.ne.s32.totalorder %s24, %s27
    %p33 = scmp.eq.s32.totalorder %s14, 0
    %p34 = por %p32, %p33
    %p35 = scmp.ne.s32.totalorder %s24, %s27
    %p36 = scmp.eq.s32.totalorder %s19, 1
    %p37 = por %p35, %p36
    %p38 = scmp.ne.s32.totalorder %s27, %s28
    %p39 = scmp.eq.s32.totalorder %s19, 0
    %p40 = por %p38, %p39
    %p41 = scmp.ne.s32.totalorder %s27, %s28
    %p42 = scmp.eq.s32.totalorder %s20, 1
    %p43 = por %p41, %p42
    %p45 = scmp.ne.s32.totalorder %s28, %s44
    %p46 = scmp.eq.s32.totalorder %s20, 0
    %p47 = por %p45, %p46
    %s49 = sadd.s32 %s48, 1
    %p52 = scmp.eq.s32.totalorder %s14, 1
    %p53 = scmp.ne.s32.totalorder %s48, %s50
    %p54 = scmp.eq.s32.totalorder %s14, 0
    %p55 = por %p53, %p54
    %p56 = scmp.ne.s32.totalorder %s48, %s50
    %p57 = scmp.eq.s32.totalorder %s19, 1
    %p58 = por %p56, %p57
    %p59 = scmp.ne.s32.totalorder %s50, %s51
    %p60 = scmp.eq.s32.totalorder %s19, 0
    %p61 = por %p59, %p60
    %p62 = scmp.ne.s32.totalorder %s50, %s51
    %p63 = scmp.eq.s32.totalorder %s20, 1
    %p64 = por %p62, %p63
    %p66 = scmp.ne.s32.totalorder %s51, %s65
    %p67 = scmp.eq.s32.totalorder %s20, 0
    %p68 = por %p66, %p67
    %s70 = sadd.s32 %s69, 1
    %p73 = scmp.eq.s32.totalorder %s14, 1
    %p74 = scmp.ne.s32.totalorder %s69, %s71
    %p75 = scmp.eq.s32.totalorder %s14, 0
    %p76 = por %p74, %p75
    %p77 = scmp.ne.s32.totalorder %s69, %s71
    %p78 = scmp.eq.s32.totalorder %s19, 1
    %p79 = por %p77, %p78
    %p80 = scmp.ne.s32.totalorder %s71, %s72
    %p81 = scmp.eq.s32.totalorder %s19, 0
    %p82 = por %p80, %p81
    %p83 = scmp.ne.s32.totalorder %s71, %s72
    %p84 = scmp.eq.s32.totalorder %s20, 1
    %p85 = por %p83, %p84
    %p87 = scmp.ne.s32.totalorder %s72, %s86
    %p88 = scmp.eq.s32.totalorder %s20, 0
    %p89 = por %p87, %p88
    %s91 = sadd.s32 %s90, 1
    %p94 = scmp.eq.s32.totalorder %s14, 1
    %p95 = scmp.ne.s32.totalorder %s90, %s92
    %p96 = scmp.eq.s32.totalorder %s14, 0
    %p97 = por %p95, %p96
    %p98 = scmp.ne.s32.totalorder %s90, %s92
    %p99 = scmp.eq.s32.totalorder %s19, 1
    %p100 = por %p98, %p99
    %p101 = scmp.ne.s32.totalorder %s92, %s93
    %p102 = scmp.eq.s32.totalorder %s19, 0
    %p103 = por %p101, %p102
    %p104 = scmp.ne.s32.totalorder %s92, %s93
    %p105 = scmp.eq.s32.totalorder %s20, 1
    %p106 = por %p104, %p105
    %p108 = scmp.ne.s32.totalorder %s93, %s107
    %p109 = scmp.eq.s32.totalorder %s20, 0
    %p110 = por %p108, %p109
    %s112 = sadd.s32 %s111, 1
    %p115 = scmp.eq.s32.totalorder %s14, 1
    %p116 = scmp.ne.s32.totalorder %s111, %s113
    %p117 = scmp.eq.s32.totalorder %s14, 0
    %p118 = por %p116, %p117
    %p119 = scmp.ne.s32.totalorder %s111, %s113
    %p120 = scmp.eq.s32.totalorder %s19, 1
    %p121 = por %p119, %p120
    %p122 = scmp.ne.s32.totalorder %s113, %s114
    %p123 = scmp.eq.s32.totalorder %s19, 0
    %p124 = por %p122, %p123
    %p125 = scmp.ne.s32.totalorder %s113, %s114
    %p126 = scmp.eq.s32.totalorder %s20, 1
    %p127 = por %p125, %p126
    %p129 = scmp.ne.s32.totalorder %s114, %s128
    %p130 = scmp.eq.s32.totalorder %s20, 0
    %p131 = por %p129, %p130
    %s133 = sadd.s32 %s132, 1
    %p136 = scmp.eq.s32.totalorder %s14, 1
    %p137 = scmp.ne.s32.totalorder %s132, %s134
    %p138 = scmp.eq.s32.totalorder %s14, 0
    %p139 = por %p137, %p138
    %p140 = scmp.ne.s32.totalorder %s132, %s134
    %p141 = scmp.eq.s32.totalorder %s19, 1
    %p142 = por %p140, %p141
    %p143 = scmp.ne.s32.totalorder %s134, %s135
    %p144 = scmp.eq.s32.totalorder %s19, 0
    %p145 = por %p143, %p144
    %p146 = scmp.ne.s32.totalorder %s134, %s135
    %p147 = scmp.eq.s32.totalorder %s20, 1
    %p148 = por %p146, %p147
    %p150 = scmp.ne.s32.totalorder %s135, %s149
    %p151 = scmp.eq.s32.totalorder %s20, 0
    %p152 = por %p150, %p151
    %s154 = sadd.s32 %s153, 1
    %p157 = scmp.eq.s32.totalorder %s14, 1
    %p158 = scmp.ne.s32.totalorder %s153, %s155
    %p159 = scmp.eq.s32.totalorder %s14, 0
    %p160 = por %p158, %p159
    %p161 = scmp.ne.s32.totalorder %s153, %s155
    %p162 = scmp.eq.s32.totalorder %s19, 1
    %p163 = por %p161, %p162
    %p164 = scmp.ne.s32.totalorder %s155, %s156
    %p165 = scmp.eq.s32.totalorder %s19, 0
    %p166 = por %p164, %p165
    %p167 = scmp.ne.s32.totalorder %s155, %s156
    %p168 = scmp.eq.s32.totalorder %s20, 1
    %p169 = por %p167, %p168
    %p171 = scmp.ne.s32.totalorder %s156, %s170
    %p172 = scmp.eq.s32.totalorder %s20, 0
    %p173 = por %p171, %p172
    %s175 = sadd.s32 %s174, 1
    %p178 = scmp.eq.s32.totalorder %s14, 1
    %p179 = scmp.ne.s32.totalorder %s174, %s176
    %p180 = scmp.eq.s32.totalorder %s14, 0
    %p181 = por %p179, %p180
    %p182 = scmp.ne.s32.totalorder %s174, %s176
    %p183 = scmp.eq.s32.totalorder %s19, 1
    %p184 = por %p182, %p183
    %p185 = scmp.ne.s32.totalorder %s176, %s177
    %p186 = scmp.eq.s32.totalorder %s19, 0
    %p187 = por %p185, %p186
    %p188 = scmp.ne.s32.totalorder %s176, %s177
    %p189 = scmp.eq.s32.totalorder %s20, 1
    %p190 = por %p188, %p189
    %p192 = scmp.ne.s32.totalorder %s177, %s191
    %p193 = scmp.eq.s32.totalorder %s20, 0
    %p194 = por %p192, %p193
    %s195 = ssub.s32 %s14, %s21
    %p196 = scmp.eq.s32.totalorder %s195, 0
    %s198 = sadd.s32 %s197, 1
    %s199 = scalar_select %p196, %s197, %s198
    %p202 = pneg %p196
    %p203 = scmp.eq.s32.totalorder %s14, 1
    %p204 = por %p202, %p203
    %p205 = scmp.ne.s32.totalorder %s197, %s200
    %p206 = scmp.eq.s32.totalorder %s14, 0
    %p207 = por %p205, %p206
    %p208 = scmp.ne.s32.totalorder %s197, %s200
    %p209 = scmp.eq.s32.totalorder %s19, 1
    %p210 = por %p208, %p209
    %p211 = scmp.ne.s32.totalorder %s200, %s201
    %p212 = scmp.eq.s32.totalorder %s19, 0
    %p213 = por %p211, %p212
    %p214 = scmp.ne.s32.totalorder %s200, %s201
    %p215 = scmp.eq.s32.totalorder %s20, 1
    %p216 = por %p214, %p215
    %p218 = scmp.ne.s32.totalorder %s201, %s217
    %p219 = scmp.eq.s32.totalorder %s20, 0
    %p220 = por %p218, %p219
    %p221 = scmp.le.s32.totalorder 1, %s14
    %p222 = scmp.lt.s32.totalorder %s14, 3
    %p223 = pnand %p221, %p222
    %p224 = pneg %p223
    // Predicated region
    $region9: #{basic_block_forward.1} parent=5 // pred_check
      _
    $region10: #{basic_block_forward.1} parent=5 // pred_check_branch
      %226 = sbr.rel (%p223) target = $region12
    $region11: #{basic_block_forward.1} parent=5 // pred_region
      %s227 = ssub.s32 %s14, 1
      // Predicated region
      $region13: #{basic_block_forward.1} parent=11 // pred_check
        %p228 = pneg %p61
      $region14: #{basic_block_forward.1} parent=11 // pred_check_branch
        %230 = sbr.rel (%p228) target = $region16
      $region15: #{basic_block_forward.1} parent=11 // pred_region
        _
      $region16: #{basic_block_forward.1} parent=11 // pred_fallthru
        _
      // Predicated region
      $region17: #{basic_block_forward.1} parent=11 // pred_check
        %p231 = pneg %p82
      $region18: #{basic_block_forward.1} parent=11 // pred_check_branch
        %233 = sbr.rel (%p231) target = $region20
      $region19: #{basic_block_forward.1} parent=11 // pred_region
        _
      $region20: #{basic_block_forward.1} parent=11 // pred_fallthru
        _
      // Predicated region
      $region21: #{basic_block_forward.1} parent=11 // pred_check
        %p234 = pneg %p103
      $region22: #{basic_block_forward.1} parent=11 // pred_check_branch
        %236 = sbr.rel (%p234) target = $region24
      $region23: #{basic_block_forward.1} parent=11 // pred_region
        _
      $region24: #{basic_block_forward.1} parent=11 // pred_fallthru
        _
      // Predicated region
      $region25: #{basic_block_forward.1} parent=11 // pred_check
        %p237 = pneg %p124
      $region26: #{basic_block_forward.1} parent=11 // pred_check_branch
        %239 = sbr.rel (%p237) target = $region28
      $region27: #{basic_block_forward.1} parent=11 // pred_region
        _
      $region28: #{basic_block_forward.1} parent=11 // pred_fallthru
        _
      // Predicated region
      $region29: #{basic_block_forward.1} parent=11 // pred_check
        %p240 = pneg %p145
      $region30: #{basic_block_forward.1} parent=11 // pred_check_branch
        %242 = sbr.rel (%p240) target = $region32
      $region31: #{basic_block_forward.1} parent=11 // pred_region
        _
      $region32: #{basic_block_forward.1} parent=11 // pred_fallthru
        _
      // Predicated region
      $region33: #{basic_block_forward.1} parent=11 // pred_check
        %p243 = pneg %p166
      $region34: #{basic_block_forward.1} parent=11 // pred_check_branch
        %245 = sbr.rel (%p243) target = $region36
      $region35: #{basic_block_forward.1} parent=11 // pred_region
        _
      $region36: #{basic_block_forward.1} parent=11 // pred_fallthru
        _
      // Predicated region
      $region37: #{basic_block_forward.1} parent=11 // pred_check
        %p246 = pneg %p187
      $region38: #{basic_block_forward.1} parent=11 // pred_check_branch
        %248 = sbr.rel (%p246) target = $region40
      $region39: #{basic_block_forward.1} parent=11 // pred_region
        _
      $region40: #{basic_block_forward.1} parent=11 // pred_fallthru
        _
    $region12: #{basic_block_forward.1} parent=5 // pred_fallthru
      _
    %p249 = scmp.lt.s32.totalorder %s14, 2
    // Predicated region
    $region41: #{basic_block_forward.1} parent=5 // pred_check
      %p250 = pneg %p249
    $region42: #{basic_block_forward.1} parent=5 // pred_check_branch
      %252 = sbr.rel (%p250) target = $region44
    $region43: #{basic_block_forward.1} parent=5 // pred_region
      // Predicated region
      $region45: #{basic_block_forward.1} parent=43 // pred_check
        %p253 = pneg %p34
      $region46: #{basic_block_forward.1} parent=43 // pred_check_branch
        %255 = sbr.rel (%p253) target = $region48
      $region47: #{basic_block_forward.1} parent=43 // pred_region
        %p256 = scmp.lt.s32.totalorder %s14, 1
        %s257 = scalar_select %p256, %s14, 1
        %s258 = smul.addr %s257, 3
        %s259 = smul.addr %s258, 2
        %s260 = scalar_lea.vmem %s0, %s259
      $region48: #{basic_block_forward.1} parent=43 // pred_fallthru
        _
    $region44: #{basic_block_forward.1} parent=5 // pred_fallthru
      _
    %p261 = scmp.le.s32.totalorder 1, %s14
    %p262 = scmp.lt.s32.totalorder %s14, 3
    %p263 = pnand %p261, %p262
    %p264 = pneg %p263
    // Predicated region
    $region49: #{basic_block_forward.1} parent=5 // pred_check
      _
    $region50: #{basic_block_forward.1} parent=5 // pred_check_branch
      %266 = sbr.rel (%p263) target = $region52
    $region51: #{basic_block_forward.1} parent=5 // pred_region
      %s267 = ssub.s32 %s14, 1
      %p268 = scmp.lt.s32.totalorder %s19, 1
      %s269 = scalar_select %p268, %s19, 1
      %s270 = smul.addr %s269, 3
      %s271 = smul.addr %s270, 2
      %s272 = scalar_lea.vmem %s0, %s271
      %p273 = pneg %p40
      %p274 = pneg %p37
      %p275 = pneg %p61
      %p276 = pneg %p58
      %p277 = pneg %p82
      %p278 = pneg %p79
      %p279 = pneg %p103
      %p280 = pneg %p100
      %p281 = pneg %p124
      %p282 = pneg %p121
      %p283 = pneg %p145
      %p284 = pneg %p142
      %p285 = pneg %p166
      %p286 = pneg %p163
      %p287 = pneg %p187
      %p288 = pneg %p184
      %p289 = pneg %p213
      %p290 = pneg %p210
      %p291 = scmp.lt.s32.totalorder %s19, 1
      %s292 = scalar_select %p291, %s19, 1
      %s293 = smul.addr %s292, 3
      %s294 = smul.addr %s293, 4
      %s295 = scalar_lea.vmem %s8, %s294
      %p296 = scmp.lt.s32.totalorder %s19, 1
      %s297 = scalar_select %p296, %s19, 1
      %s298 = smul.addr %s297, 3
      %s299 = smul.addr %s298, 2
      %s300 = scalar_lea.vmem %s0, %s299
      %p301 = scmp.lt.s32.totalorder %s19, 1
      %s302 = scalar_select %p301, %s19, 1
      %s303 = smul.addr %s302, 3
      %s304 = smul.addr %s303, 4
      %s305 = scalar_lea.vmem %s8, %s304
      %307 = vst [vmem:[#allocation3] sm:$0xff] 0
      %vm308 = vcmask 551936
      %309 = vst.msk [vmem:[#allocation3 + $0x8] sm:$0xf] %vm308, 0
      %310 = vst [vmem:[#allocation3 + $0xc] sm:$0xff] 0
      %311 = vst.msk [vmem:[#allocation3 + $0x14] sm:$0xf] %vm308, 0
      %312 = vst [vmem:[#allocation3 + $0x18] sm:$0xff] 0
      %313 = vst.msk [vmem:[#allocation3 + $0x20] sm:$0xf] %vm308, 0
      %314 = vst [vmem:[#allocation3 + $0x24] sm:$0xff] 0
      %315 = vst.msk [vmem:[#allocation3 + $0x2c] sm:$0xf] %vm308, 0
      %316 = vst [vmem:[#allocation3 + $0x30] sm:$0xff] 0
      %317 = vst.msk [vmem:[#allocation3 + $0x38] sm:$0xf] %vm308, 0
      %318 = vst [vmem:[#allocation3 + $0x3c] sm:$0xff] 0
      %319 = vst.msk [vmem:[#allocation3 + $0x44] sm:$0xf] %vm308, 0
      %320 = vst [vmem:[#allocation3 + $0x48] sm:$0xff] 0
      %321 = vst.msk [vmem:[#allocation3 + $0x50] sm:$0xf] %vm308, 0
      %322 = vst [vmem:[#allocation3 + $0x54] sm:$0xff] 0
      %323 = vst.msk [vmem:[#allocation3 + $0x5c] sm:$0xf] %vm308, 0
      %324 = vst [vmem:[#allocation3 + $0x60] sm:$0xff] 0
      %325 = vst.msk [vmem:[#allocation3 + $0x68] sm:$0xf] %vm308, 0
      %vm326 = vcmask 148480
      %327 = vst.msk [vmem:[#allocation2] sm:$0x3] %vm326, 0
      %vm328 = vcmask 861880
      %329 = vst.msk [vmem:[#allocation2 + $0x4] sm:$0x3] %vm328, 0
      %v330 = vld [vmem:[%s1] sm:$0x3]
      %v331 = vld [vmem:[%s4] sm:$0x3]
      %v332 = vld [vmem:[%s2] sm:$0xf]
      %v333 = vld [vmem:[%s3] sm:$0xf]
      %v334 = vld [vmem:[%s5] sm:$0xf]
      %v335 = vld [vmem:[%s6] sm:$0xf]
      %v336 = vld [vmem:[%s7] sm:$0x7]
      %v337 = vld [vmem:[%s300] sm:$0x3f]
      %v339 = vcombine.high %v337, %v337
      %v341 = vunpack.c.l.s4 1983009808
      %v342 = vunpack.c.0.s8 %v341
      %v343 = vlaneseq
      %v344 = vshrl.u32 %v343, 7
      %v345 = vsub.s32 %v342, %v344
      %v346 = vrot.slane %v337, %v345
      %v348 = vunpack.c.l.s4 1983009808
      %v349 = vunpack.c.0.s8 %v348
      %v350 = vlaneseq
      %v351 = vshrl.u32 %v350, 7
      %v352 = vsub.s32 %v349, %v351
      %v353 = vrot.slane %v339, %v352
      %356 = vst [vmem:[#allocation3] sm:$0x33] %v346
      %vm357 = vcmask 549888
      %358 = vst.msk [vmem:[#allocation3 + $0x8] sm:$0x3] %vm357, %v353
      %v359 = vld [vmem:[%s300] sm:$0x3f]
      %v361 = vcombine.high %v359, %v359
      %v363 = vunpack.c.l.s4 1983009808
      %v364 = vunpack.c.0.s8 %v363
      %v365 = vlaneseq
      %v366 = vshrl.u32 %v365, 7
      %v367 = vsub.s32 %v364, %v366
      %v368 = vrot.slane %v359, %v367
      %v370 = vunpack.c.l.s4 1983009808
      %v371 = vunpack.c.0.s8 %v370
      %v372 = vlaneseq
      %v373 = vshrl.u32 %v372, 7
      %v374 = vsub.s32 %v371, %v373
      %v375 = vrot.slane %v361, %v374
      %376 = vrot.lane.b32.xlu0 %v368, 127
      %v377 = vpop.permute.xlu0 %376
      %378 = vrot.lane.b32.xlu0 %v375, 127
      %v379 = vpop.permute.xlu0 %378
      %v380 = vrot.slane %v377, 4
      %v381 = vrot.slane %v379, 4
      %vm382 = vcmask 1043456
      %v383 = vsel %vm382, %v380, %v381
      %vm384 = vcmask 1039360
      %v385 = vsel %vm384, %v377, %v383
      %388 = vst [vmem:[#allocation3 + $0xc] sm:$0x33] %v385
      %389 = vst.msk [vmem:[#allocation3 + $0x14] sm:$0x3] %vm357, %v379
      %v390 = vld [vmem:[%s300] sm:$0x3f]
      %v392 = vcombine.high %v390, %v390
      %v394 = vunpack.c.l.s4 1983009808
      %v395 = vunpack.c.0.s8 %v394
      %v396 = vlaneseq
      %v397 = vshrl.u32 %v396, 7
      %v398 = vsub.s32 %v395, %v397
      %v399 = vrot.slane %v390, %v398
      %v401 = vunpack.c.l.s4 1983009808
      %v402 = vunpack.c.0.s8 %v401
      %v403 = vlaneseq
      %v404 = vshrl.u32 %v403, 7
      %v405 = vsub.s32 %v402, %v404
      %v406 = vrot.slane %v392, %v405
      %407 = vrot.lane.b32.xlu0 %v399, 126
      %v408 = vpop.permute.xlu0 %407
      %409 = vrot.lane.b32.xlu0 %v406, 126
      %v410 = vpop.permute.xlu0 %409
      %v411 = vrot.slane %v408, 4
      %v412 = vrot.slane %v410, 4
      %v413 = vsel %vm382, %v411, %v412
      %vm414 = vcmask 1031168
      %v415 = vsel %vm414, %v408, %v413
      %418 = vst [vmem:[#allocation3 + $0x18] sm:$0x33] %v415
      %419 = vst.msk [vmem:[#allocation3 + $0x20] sm:$0x3] %vm357, %v410
      %v420 = vld [vmem:[%s300] sm:$0x3f]
      %v422 = vcombine.high %v420, %v420
      %v424 = vunpack.c.l.s4 1983009808
      %v425 = vunpack.c.0.s8 %v424
      %v426 = vlaneseq
      %v427 = vshrl.u32 %v426, 7
      %v428 = vsub.s32 %v425, %v427
      %v429 = vrot.slane %v420, %v428
      %v431 = vunpack.c.l.s4 1983009808
      %v432 = vunpack.c.0.s8 %v431
      %v433 = vlaneseq
      %v434 = vshrl.u32 %v433, 7
      %v435 = vsub.s32 %v432, %v434
      %v436 = vrot.slane %v422, %v435
      %437 = vrot.lane.b32.xlu0 %v429, 110
      %v438 = vpop.permute.xlu0 %437
      %439 = vrot.lane.b32.xlu0 %v436, 110
      %v440 = vpop.permute.xlu0 %439
      %v441 = vrot.slane %v438, 4
      %v442 = vrot.slane %v440, 4
      %v443 = vsel %vm382, %v441, %v442
      %vm444 = vcmask 900096
      %v445 = vsel %vm444, %v438, %v443
      %448 = vst [vmem:[#allocation3 + $0x24] sm:$0x33] %v445
      %449 = vst.msk [vmem:[#allocation3 + $0x2c] sm:$0x3] %vm357, %v440
      %v450 = vld [vmem:[%s300] sm:$0x3f]
      %v452 = vcombine.high %v450, %v450
      %v454 = vunpack.c.l.s4 1983009808
      %v455 = vunpack.c.0.s8 %v454
      %v456 = vlaneseq
      %v457 = vshrl.u32 %v456, 7
      %v458 = vsub.s32 %v455, %v457
      %v459 = vrot.slane %v450, %v458
      %v461 = vunpack.c.l.s4 1983009808
      %v462 = vunpack.c.0.s8 %v461
      %v463 = vlaneseq
      %v464 = vshrl.u32 %v463, 7
      %v465 = vsub.s32 %v462, %v464
      %v466 = vrot.slane %v452, %v465
      %467 = vrot.lane.b32.xlu0 %v459, 109
      %v468 = vpop.permute.xlu0 %467
      %469 = vrot.lane.b32.xlu0 %v466, 109
      %v470 = vpop.permute.xlu0 %469
      %v471 = vrot.slane %v468, 4
      %v472 = vrot.slane %v470, 4
      %v473 = vsel %vm382, %v471, %v472
      %vm474 = vcmask 891904
      %v475 = vsel %vm474, %v468, %v473
      %478 = vst [vmem:[#allocation3 + $0x30] sm:$0x33] %v475
      %479 = vst.msk [vmem:[#allocation3 + $0x38] sm:$0x3] %vm357, %v470
      %v480 = vld [vmem:[%s300] sm:$0x3f]
      %v482 = vcombine.high %v480, %v480
      %v484 = vunpack.c.l.s4 1983009808
      %v485 = vunpack.c.0.s8 %v484
      %v486 = vlaneseq
      %v487 = vshrl.u32 %v486, 7
      %v488 = vsub.s32 %v485, %v487
      %v489 = vrot.slane %v480, %v488
      %v491 = vunpack.c.l.s4 1983009808
      %v492 = vunpack.c.0.s8 %v491
      %v493 = vlaneseq
      %v494 = vshrl.u32 %v493, 7
      %v495 = vsub.s32 %v492, %v494
      %v496 = vrot.slane %v482, %v495
      %497 = vrot.lane.b32.xlu0 %v489, 108
      %v498 = vpop.permute.xlu0 %497
      %499 = vrot.lane.b32.xlu0 %v496, 108
      %v500 = vpop.permute.xlu0 %499
      %v501 = vrot.slane %v498, 4
      %v502 = vrot.slane %v500, 4
      %v503 = vsel %vm382, %v501, %v502
      %vm504 = vcmask 883712
      %v505 = vsel %vm504, %v498, %v503
      %508 = vst [vmem:[#allocation3 + $0x3c] sm:$0x33] %v505
      %509 = vst.msk [vmem:[#allocation3 + $0x44] sm:$0x3] %vm357, %v500
      %v510 = vld [vmem:[%s300] sm:$0x3f]
      %v512 = vcombine.high %v510, %v510
      %v514 = vunpack.c.l.s4 1983009808
      %v515 = vunpack.c.0.s8 %v514
      %v516 = vlaneseq
      %v517 = vshrl.u32 %v516, 7
      %v518 = vsub.s32 %v515, %v517
      %v519 = vrot.slane %v510, %v518
      %v521 = vunpack.c.l.s4 1983009808
      %v522 = vunpack.c.0.s8 %v521
      %v523 = vlaneseq
      %v524 = vshrl.u32 %v523, 7
      %v525 = vsub.s32 %v522, %v524
      %v526 = vrot.slane %v512, %v525
      %527 = vrot.lane.b32.xlu0 %v519, 92
      %v528 = vpop.permute.xlu0 %527
      %529 = vrot.lane.b32.xlu0 %v526, 92
      %v530 = vpop.permute.xlu0 %529
      %v531 = vrot.slane %v528, 4
      %v532 = vrot.slane %v530, 4
      %v533 = vsel %vm382, %v531, %v532
      %vm534 = vcmask 752640
      %v535 = vsel %vm534, %v528, %v533
      %538 = vst [vmem:[#allocation3 + $0x48] sm:$0x33] %v535
      %539 = vst.msk [vmem:[#allocation3 + $0x50] sm:$0x3] %vm357, %v530
      %v540 = vld [vmem:[%s300] sm:$0x3f]
      %v542 = vcombine.high %v540, %v540
      %v544 = vunpack.c.l.s4 1983009808
      %v545 = vunpack.c.0.s8 %v544
      %v546 = vlaneseq
      %v547 = vshrl.u32 %v546, 7
      %v548 = vsub.s32 %v545, %v547
      %v549 = vrot.slane %v540, %v548
      %v551 = vunpack.c.l.s4 1983009808
      %v552 = vunpack.c.0.s8 %v551
      %v553 = vlaneseq
      %v554 = vshrl.u32 %v553, 7
      %v555 = vsub.s32 %v552, %v554
      %v556 = vrot.slane %v542, %v555
      %557 = vrot.lane.b32.xlu0 %v549, 91
      %v558 = vpop.permute.xlu0 %557
      %559 = vrot.lane.b32.xlu0 %v556, 91
      %v560 = vpop.permute.xlu0 %559
      %v561 = vrot.slane %v558, 4
      %v562 = vrot.slane %v560, 4
      %v563 = vsel %vm382, %v561, %v562
      %vm564 = vcmask 744448
      %v565 = vsel %vm564, %v558, %v563
      %568 = vst [vmem:[#allocation3 + $0x54] sm:$0x33] %v565
      %569 = vst.msk [vmem:[#allocation3 + $0x5c] sm:$0x3] %vm357, %v560
      %v570 = vld [vmem:[%s300] sm:$0x3f]
      %v572 = vcombine.high %v570, %v570
      %v574 = vunpack.c.l.s4 1983009808
      %v575 = vunpack.c.0.s8 %v574
      %v576 = vlaneseq
      %v577 = vshrl.u32 %v576, 7
      %v578 = vsub.s32 %v575, %v577
      %v579 = vrot.slane %v570, %v578
      %v581 = vunpack.c.l.s4 1983009808
      %v582 = vunpack.c.0.s8 %v581
      %v583 = vlaneseq
      %v584 = vshrl.u32 %v583, 7
      %v585 = vsub.s32 %v582, %v584
      %v586 = vrot.slane %v572, %v585
      %587 = vrot.lane.b32.xlu0 %v579, 90
      %v588 = vpop.permute.xlu0 %587
      %589 = vrot.lane.b32.xlu0 %v586, 90
      %v590 = vpop.permute.xlu0 %589
      %v591 = vrot.slane %v588, 4
      %v592 = vrot.slane %v590, 4
      %v593 = vsel %vm382, %v591, %v592
      %vm594 = vcmask 736256
      %v595 = vsel %vm594, %v588, %v593
      %598 = vst [vmem:[#allocation3 + $0x60] sm:$0x33] %v595
      %599 = vst.msk [vmem:[#allocation3 + $0x68] sm:$0x3] %vm357, %v590
      %v600 = vld [vmem:[#allocation3] sm:$0xff]
      %v601 = vld [vmem:[#allocation3 + $0x8] sm:$0xf]
      %v602 = vld [vmem:[#allocation3 + $0xc] sm:$0xff]
      %v603 = vld [vmem:[#allocation3 + $0x14] sm:$0xf]
      %v604 = vld [vmem:[#allocation3 + $0x18] sm:$0xff]
      %v605 = vld [vmem:[#allocation3 + $0x20] sm:$0xf]
      %v606 = vld [vmem:[#allocation3 + $0x24] sm:$0xff]
      %v607 = vld [vmem:[#allocation3 + $0x2c] sm:$0xf]
      %v608 = vld [vmem:[#allocation3 + $0x30] sm:$0xff]
      %v609 = vld [vmem:[#allocation3 + $0x38] sm:$0xf]
      %v610 = vld [vmem:[#allocation3 + $0x3c] sm:$0xff]
      %v611 = vld [vmem:[#allocation3 + $0x44] sm:$0xf]
      %v612 = vld [vmem:[#allocation3 + $0x48] sm:$0xff]
      %v613 = vld [vmem:[#allocation3 + $0x50] sm:$0xf]
      %v614 = vld [vmem:[#allocation3 + $0x54] sm:$0xff]
      %v615 = vld [vmem:[#allocation3 + $0x5c] sm:$0xf]
      %v616 = vld [vmem:[#allocation3 + $0x60] sm:$0xff]
      %v617 = vld [vmem:[#allocation3 + $0x68] sm:$0xf]
      %v636 = vunpack.c.l.b16 %v600
      %v637 = vunpack.c.h.b16 %v600
      %v638 = vunpack.c.l.b16 %v601
      %v639 = vunpack.c.l.b16 %v602
      %v640 = vunpack.c.h.b16 %v602
      %v641 = vunpack.c.l.b16 %v603
      %v642 = vunpack.c.l.b16 %v604
      %v643 = vunpack.c.h.b16 %v604
      %v644 = vunpack.c.l.b16 %v605
      %v645 = vunpack.c.l.b16 %v606
      %v646 = vunpack.c.h.b16 %v606
      %v647 = vunpack.c.l.b16 %v607
      %v648 = vunpack.c.l.b16 %v608
      %v649 = vunpack.c.h.b16 %v608
      %v650 = vunpack.c.l.b16 %v609
      %v651 = vunpack.c.l.b16 %v610
      %v652 = vunpack.c.h.b16 %v610
      %v653 = vunpack.c.l.b16 %v611
      %v654 = vunpack.c.l.b16 %v612
      %v655 = vunpack.c.h.b16 %v612
      %v656 = vunpack.c.l.b16 %v613
      %v657 = vunpack.c.l.b16 %v614
      %v658 = vunpack.c.h.b16 %v614
      %v659 = vunpack.c.l.b16 %v615
      %v660 = vunpack.c.l.b16 %v616
      %v661 = vunpack.c.h.b16 %v616
      %v662 = vunpack.c.l.b16 %v617
      %v663 = vpack.c.b16 %v639, %v636
      %v664 = vpack.c.b16 %v640, %v637
      %v665 = vpack.c.b16 %v641, %v638
      %v666 = vpack.c.b16 %v645, %v642
      %v667 = vpack.c.b16 %v646, %v643
      %v668 = vpack.c.b16 %v647, %v644
      %v669 = vpack.c.b16 %v651, %v648
      %v670 = vpack.c.b16 %v652, %v649
      %v671 = vpack.c.b16 %v653, %v650
      %v672 = vpack.c.b16 %v657, %v654
      %v673 = vpack.c.b16 %v658, %v655
      %v674 = vpack.c.b16 %v659, %v656
      %v675 = vpack.c.b16 %v660, %v660
      %v676 = vpack.c.b16 %v661, %v661
      %v677 = vpack.c.b16 %v662, %v662
      %vm690 = vcmask 588800
      %v692 = vsel %vm690, %v330, 0
      %vm694 = vcmask 1043456
      %v696 = vsel %vm694, %v675, 0
      %v699 = vsel %vm694, %v676, 0
      %v702 = vsel %vm694, %v677, 0
      %704 = vmatprep.subr.bf16.mxu0 %v664
      %705 = vmatpush1.bf16.msra.mxu0 %v663
      %706 = vmatprep.subr.bf16.mxu0 %v667
      %707 = vmatpush1.bf16.msra.mxu0 %v666
      %708 = vmatprep.subr.bf16.mxu0 %v670
      %709 = vmatpush1.bf16.msra.mxu0 %v669
      %710 = vmatprep.subr.bf16.mxu0 %v673
      %711 = vmatpush1.bf16.msra.mxu0 %v672
      %712 = vmatprep.subr.bf16.mxu0 %v699
      %713 = vmatpush1.bf16.msra.mxu0 %v696
      %714 = vmatprep.subr.bf16.mxu0 0
      %715 = vmatpush1.bf16.msra.mxu0 0
      %716 = vmatprep.subr.bf16.mxu0 0
      %717 = vmatpush1.bf16.msra.mxu0 0
      %718 = vmatprep.subr.bf16.mxu0 0
      %719 = vmatpush1.bf16.msra.mxu0 0
      %720 = vmatprep.subr.bf16.mxu0 0
      %721 = vmatpush1.bf16.msra.mxu0 0
      %722 = vmatprep.subr.bf16.mxu0 0
      %723 = vmatpush1.bf16.msra.mxu0 0
      %724 = vmatprep.subr.bf16.mxu0 0
      %725 = vmatpush1.bf16.msra.mxu0 0
      %726 = vmatprep.subr.bf16.mxu0 0
      %727 = vmatpush1.bf16.msra.mxu0 0
      %728 = vmatprep.subr.bf16.mxu0 0
      %729 = vmatpush1.bf16.msra.mxu0 0
      %730 = vmatprep.subr.bf16.mxu0 0
      %731 = vmatpush1.bf16.msra.mxu0 0
      %732 = vmatprep.subr.bf16.mxu0 0
      %733 = vmatpush1.bf16.msra.mxu0 0
      %734 = vmatprep.subr.bf16.mxu0 0
      %735 = vmatpush1.bf16.msra.mxu0 0
      %736 = vmatprep.mubr.bf16.mxu0 0
      %737 = vmatmul.mubr.bf16.gmra.mrb[0].mxu0 %v692
      %v738 = vpop.f32.mrb[0].mxu0
      %v739 = vadd.f32 0.0, %v738
      %v740 = vpop.f32.mrb[0].mxu0
      %v741 = vadd.f32 0.0, %v740
      %v742 = vpop.f32.mrb[0].mxu0
      %v743 = vpop.f32.mrb[0].mxu0
      %744 = vdwg.mxu0
      %745 = vmatprep.subr.bf16.mxu0 0
      %746 = vmatpush1.bf16.msra.mxu0 %v665
      %747 = vmatprep.subr.bf16.mxu0 0
      %748 = vmatpush1.bf16.msra.mxu0 %v668
      %749 = vmatprep.subr.bf16.mxu0 0
      %750 = vmatpush1.bf16.msra.mxu0 %v671
      %751 = vmatprep.subr.bf16.mxu0 0
      %752 = vmatpush1.bf16.msra.mxu0 %v674
      %753 = vmatprep.subr.bf16.mxu0 0
      %754 = vmatpush1.bf16.msra.mxu0 %v702
      %755 = vmatprep.subr.bf16.mxu0 0
      %756 = vmatpush1.bf16.msra.mxu0 0
      %757 = vmatprep.subr.bf16.mxu0 0
      %758 = vmatpush1.bf16.msra.mxu0 0
      %759 = vmatprep.subr.bf16.mxu0 0
      %760 = vmatpush1.bf16.msra.mxu0 0
      %761 = vmatprep.subr.bf16.mxu0 0
      %762 = vmatpush1.bf16.msra.mxu0 0
      %763 = vmatprep.subr.bf16.mxu0 0
      %764 = vmatpush1.bf16.msra.mxu0 0
      %765 = vmatprep.subr.bf16.mxu0 0
      %766 = vmatpush1.bf16.msra.mxu0 0
      %767 = vmatprep.subr.bf16.mxu0 0
      %768 = vmatpush1.bf16.msra.mxu0 0
      %769 = vmatprep.subr.bf16.mxu0 0
      %770 = vmatpush1.bf16.msra.mxu0 0
      %771 = vmatprep.subr.bf16.mxu0 0
      %772 = vmatpush1.bf16.msra.mxu0 0
      %773 = vmatprep.subr.bf16.mxu0 0
      %774 = vmatpush1.bf16.msra.mxu0 0
      %775 = vmatprep.subr.bf16.mxu0 0
      %776 = vmatpush1.bf16.msra.mxu0 0
      %777 = vmatprep.mubr.bf16.mxu0 0
      %778 = vmatmul.mubr.bf16.gmra.mrb[0].mxu0 %v692
      %v779 = vpop.f32.mrb[0].mxu0
      %v780 = vadd.f32 0.0, %v779
      %v781 = vpop.f32.mrb[0].mxu0
      %v782 = vpop.f32.mrb[0].mxu0
      %v783 = vpop.f32.mrb[0].mxu0
      %784 = vdwg.mxu0
      %786 = vset.pattern.permute.xlu0 0
      %787 = vperm.xlu0 %786, %v332
      %v788 = vpop.permute.xlu0 %787
      %v790 = vmul.f32 %v739, %v788
      %v791 = vmul.f32 %v741, %v788
      %v792 = vmul.f32 %v780, %v788
      %794 = vset.pattern.permute.xlu0 0
      %795 = vperm.xlu0 %794, %v333
      %v796 = vpop.permute.xlu0 %795
      %v798 = vadd.f32 %v790, %v796
      %v799 = vadd.f32 %v791, %v796
      %v800 = vadd.f32 %v792, %v796
      %v801 = vmax.f32 %v798, 0.0
      %v802 = vmax.f32 %v799, 0.0
      %v803 = vmax.f32 %v800, 0.0
      %v805 = vlaneseq
      %v806 = vshrl.u32 %v805, 7
      %v807 = vsub.s32 0, %v806
      %v808 = vrot.slane %v336, %v807
      %v809 = vlaneseq
      %v810 = vshrl.u32 %v809, 7
      %v811 = vsub.s32 1, %v810
      %v812 = vrot.slane %v336, %v811
      %v813 = vlaneseq
      %v814 = vshrl.u32 %v813, 7
      %v815 = vsub.s32 2, %v814
      %v816 = vrot.slane %v336, %v815
      %v820 = vmul.f32 %v801, %v808
      %v821 = vmul.f32 %v802, %v812
      %v822 = vmul.f32 %v803, %v816
      %v823 = vpack.c.bf16 %v820, %v820
      %v824 = vpack.c.bf16 %v821, %v821
      %v825 = vpack.c.bf16 %v822, %v822
      %v829 = vcombine.low %v823, %v824
      %v831 = vunpack.c.l.s4 1983009808
      %v832 = vunpack.c.0.s8 %v831
      %v833 = vlaneseq
      %v834 = vshrl.u32 %v833, 7
      %v835 = vsub.s32 %v832, %v834
      %v836 = vrot.slane %v829, %v835
      %v838 = vunpack.c.l.s4 1983009808
      %v839 = vunpack.c.0.s8 %v838
      %v840 = vlaneseq
      %v841 = vshrl.u32 %v840, 7
      %v842 = vsub.s32 %v839, %v841
      %v843 = vrot.slane %v825, %v842
      %v844 = vcombine.low %v836, %v843
      %845 = vrot.lane.b32.xlu0 %v844, 19
      %v846 = vpop.permute.xlu0 %845
      %v847 = vrot.slane %v846, 6
      %vm848 = vcmask 154624
      %v849 = vsel %vm848, %v847, %v846
      %vm851 = vcmask 1041560
      %vm852 = vcmask 1043458
      %vm853 = vmor %vm852, %vm851
      %vm854 = vcmask 709636
      %vm855 = vmor %vm854, %vm853
      %856 = vst.msk [vmem:[#allocation2] sm:$0x3f] %vm855, %v849
      %v857 = vld [vmem:[#allocation2] sm:$0x3f]
      %v859 = vcombine.high %v857, %v857
      %v861 = vunpack.c.l.s4 1983009808
      %v862 = vunpack.c.0.s8 %v861
      %v863 = vlaneseq
      %v864 = vshrl.u32 %v863, 7
      %v865 = vsub.s32 %v862, %v864
      %v866 = vrot.slane %v857, %v865
      %v868 = vunpack.c.l.s4 1983009808
      %v869 = vunpack.c.0.s8 %v868
      %v870 = vlaneseq
      %v871 = vshrl.u32 %v870, 7
      %v872 = vsub.s32 %v869, %v871
      %v873 = vrot.slane %v859, %v872
      %876 = vst [vmem:[#allocation3] sm:$0x33] %v866
      %877 = vst.msk [vmem:[#allocation3 + $0x8] sm:$0x3] %vm357, %v873
      %v878 = vld [vmem:[#allocation2] sm:$0x3f]
      %v880 = vcombine.high %v878, %v878
      %v882 = vunpack.c.l.s4 1983009808
      %v883 = vunpack.c.0.s8 %v882
      %v884 = vlaneseq
      %v885 = vshrl.u32 %v884, 7
      %v886 = vsub.s32 %v883, %v885
      %v887 = vrot.slane %v878, %v886
      %v889 = vunpack.c.l.s4 1983009808
      %v890 = vunpack.c.0.s8 %v889
      %v891 = vlaneseq
      %v892 = vshrl.u32 %v891, 7
      %v893 = vsub.s32 %v890, %v892
      %v894 = vrot.slane %v880, %v893
      %895 = vrot.lane.b32.xlu0 %v887, 127
      %v896 = vpop.permute.xlu0 %895
      %897 = vrot.lane.b32.xlu0 %v894, 127
      %v898 = vpop.permute.xlu0 %897
      %v899 = vrot.slane %v896, 4
      %v900 = vrot.slane %v898, 4
      %v901 = vsel %vm382, %v899, %v900
      %v902 = vsel %vm384, %v896, %v901
      %905 = vst [vmem:[#allocation3 + $0xc] sm:$0x33] %v902
      %906 = vst.msk [vmem:[#allocation3 + $0x14] sm:$0x3] %vm357, %v898
      %v907 = vld [vmem:[#allocation2] sm:$0x3f]
      %v909 = vcombine.high %v907, %v907
      %v911 = vunpack.c.l.s4 1983009808
      %v912 = vunpack.c.0.s8 %v911
      %v913 = vlaneseq
      %v914 = vshrl.u32 %v913, 7
      %v915 = vsub.s32 %v912, %v914
      %v916 = vrot.slane %v907, %v915
      %v918 = vunpack.c.l.s4 1983009808
      %v919 = vunpack.c.0.s8 %v918
      %v920 = vlaneseq
      %v921 = vshrl.u32 %v920, 7
      %v922 = vsub.s32 %v919, %v921
      %v923 = vrot.slane %v909, %v922
      %924 = vrot.lane.b32.xlu0 %v916, 126
      %v925 = vpop.permute.xlu0 %924
      %926 = vrot.lane.b32.xlu0 %v923, 126
      %v927 = vpop.permute.xlu0 %926
      %v928 = vrot.slane %v925, 4
      %v929 = vrot.slane %v927, 4
      %v930 = vsel %vm382, %v928, %v929
      %v931 = vsel %vm414, %v925, %v930
      %934 = vst [vmem:[#allocation3 + $0x18] sm:$0x33] %v931
      %935 = vst.msk [vmem:[#allocation3 + $0x20] sm:$0x3] %vm357, %v927
      %v936 = vld [vmem:[#allocation2] sm:$0x3f]
      %v938 = vcombine.high %v936, %v936
      %v940 = vunpack.c.l.s4 1983009808
      %v941 = vunpack.c.0.s8 %v940
      %v942 = vlaneseq
      %v943 = vshrl.u32 %v942, 7
      %v944 = vsub.s32 %v941, %v943
      %v945 = vrot.slane %v936, %v944
      %v947 = vunpack.c.l.s4 1983009808
      %v948 = vunpack.c.0.s8 %v947
      %v949 = vlaneseq
      %v950 = vshrl.u32 %v949, 7
      %v951 = vsub.s32 %v948, %v950
      %v952 = vrot.slane %v938, %v951
      %953 = vrot.lane.b32.xlu0 %v945, 110
      %v954 = vpop.permute.xlu0 %953
      %955 = vrot.lane.b32.xlu0 %v952, 110
      %v956 = vpop.permute.xlu0 %955
      %v957 = vrot.slane %v954, 4
      %v958 = vrot.slane %v956, 4
      %v959 = vsel %vm382, %v957, %v958
      %v960 = vsel %vm444, %v954, %v959
      %963 = vst [vmem:[#allocation3 + $0x24] sm:$0x33] %v960
      %964 = vst.msk [vmem:[#allocation3 + $0x2c] sm:$0x3] %vm357, %v956
      %v965 = vld [vmem:[#allocation2] sm:$0x3f]
      %v967 = vcombine.high %v965, %v965
      %v969 = vunpack.c.l.s4 1983009808
      %v970 = vunpack.c.0.s8 %v969
      %v971 = vlaneseq
      %v972 = vshrl.u32 %v971, 7
      %v973 = vsub.s32 %v970, %v972
      %v974 = vrot.slane %v965, %v973
      %v976 = vunpack.c.l.s4 1983009808
      %v977 = vunpack.c.0.s8 %v976
      %v978 = vlaneseq
      %v979 = vshrl.u32 %v978, 7
      %v980 = vsub.s32 %v977, %v979
      %v981 = vrot.slane %v967, %v980
      %982 = vrot.lane.b32.xlu0 %v974, 109
      %v983 = vpop.permute.xlu0 %982
      %984 = vrot.lane.b32.xlu0 %v981, 109
      %v985 = vpop.permute.xlu0 %984
      %v986 = vrot.slane %v983, 4
      %v987 = vrot.slane %v985, 4
      %v988 = vsel %vm382, %v986, %v987
      %v989 = vsel %vm474, %v983, %v988
      %992 = vst [vmem:[#allocation3 + $0x30] sm:$0x33] %v989
      %993 = vst.msk [vmem:[#allocation3 + $0x38] sm:$0x3] %vm357, %v985
      %v994 = vld [vmem:[#allocation2] sm:$0x3f]
      %v996 = vcombine.high %v994, %v994
      %v998 = vunpack.c.l.s4 1983009808
      %v999 = vunpack.c.0.s8 %v998
      %v1000 = vlaneseq
      %v1001 = vshrl.u32 %v1000, 7
      %v1002 = vsub.s32 %v999, %v1001
      %v1003 = vrot.slane %v994, %v1002
      %v1005 = vunpack.c.l.s4 1983009808
      %v1006 = vunpack.c.0.s8 %v1005
      %v1007 = vlaneseq
      %v1008 = vshrl.u32 %v1007, 7
      %v1009 = vsub.s32 %v1006, %v1008
      %v1010 = vrot.slane %v996, %v1009
      %1011 = vrot.lane.b32.xlu0 %v1003, 108
      %v1012 = vpop.permute.xlu0 %1011
      %1013 = vrot.lane.b32.xlu0 %v1010, 108
      %v1014 = vpop.permute.xlu0 %1013
      %v1015 = vrot.slane %v1012, 4
      %v1016 = vrot.slane %v1014, 4
      %v1017 = vsel %vm382, %v1015, %v1016
      %v1018 = vsel %vm504, %v1012, %v1017
      %1021 = vst [vmem:[#allocation3 + $0x3c] sm:$0x33] %v1018
      %1022 = vst.msk [vmem:[#allocation3 + $0x44] sm:$0x3] %vm357, %v1014
      %v1023 = vld [vmem:[#allocation2] sm:$0x3f]
      %v1025 = vcombine.high %v1023, %v1023
      %v1027 = vunpack.c.l.s4 1983009808
      %v1028 = vunpack.c.0.s8 %v1027
      %v1029 = vlaneseq
      %v1030 = vshrl.u32 %v1029, 7
      %v1031 = vsub.s32 %v1028, %v1030
      %v1032 = vrot.slane %v1023, %v1031
      %v1034 = vunpack.c.l.s4 1983009808
      %v1035 = vunpack.c.0.s8 %v1034
      %v1036 = vlaneseq
      %v1037 = vshrl.u32 %v1036, 7
      %v1038 = vsub.s32 %v1035, %v1037
      %v1039 = vrot.slane %v1025, %v1038
      %1040 = vrot.lane.b32.xlu0 %v1032, 92
      %v1041 = vpop.permute.xlu0 %1040
      %1042 = vrot.lane.b32.xlu0 %v1039, 92
      %v1043 = vpop.permute.xlu0 %1042
      %v1044 = vrot.slane %v1041, 4
      %v1045 = vrot.slane %v1043, 4
      %v1046 = vsel %vm382, %v1044, %v1045
      %v1047 = vsel %vm534, %v1041, %v1046
      %1050 = vst [vmem:[#allocation3 + $0x48] sm:$0x33] %v1047
      %1051 = vst.msk [vmem:[#allocation3 + $0x50] sm:$0x3] %vm357, %v1043
      %v1052 = vld [vmem:[#allocation2] sm:$0x3f]
      %v1054 = vcombine.high %v1052, %v1052
      %v1056 = vunpack.c.l.s4 1983009808
      %v1057 = vunpack.c.0.s8 %v1056
      %v1058 = vlaneseq
      %v1059 = vshrl.u32 %v1058, 7
      %v1060 = vsub.s32 %v1057, %v1059
      %v1061 = vrot.slane %v1052, %v1060
      %v1063 = vunpack.c.l.s4 1983009808
      %v1064 = vunpack.c.0.s8 %v1063
      %v1065 = vlaneseq
      %v1066 = vshrl.u32 %v1065, 7
      %v1067 = vsub.s32 %v1064, %v1066
      %v1068 = vrot.slane %v1054, %v1067
      %1069 = vrot.lane.b32.xlu0 %v1061, 91
      %v1070 = vpop.permute.xlu0 %1069
      %1071 = vrot.lane.b32.xlu0 %v1068, 91
      %v1072 = vpop.permute.xlu0 %1071
      %v1073 = vrot.slane %v1070, 4
      %v1074 = vrot.slane %v1072, 4
      %v1075 = vsel %vm382, %v1073, %v1074
      %v1076 = vsel %vm564, %v1070, %v1075
      %1079 = vst [vmem:[#allocation3 + $0x54] sm:$0x33] %v1076
      %1080 = vst.msk [vmem:[#allocation3 + $0x5c] sm:$0x3] %vm357, %v1072
      %v1081 = vld [vmem:[#allocation2] sm:$0x3f]
      %v1083 = vcombine.high %v1081, %v1081
      %v1085 = vunpack.c.l.s4 1983009808
      %v1086 = vunpack.c.0.s8 %v1085
      %v1087 = vlaneseq
      %v1088 = vshrl.u32 %v1087, 7
      %v1089 = vsub.s32 %v1086, %v1088
      %v1090 = vrot.slane %v1081, %v1089
      %v1092 = vunpack.c.l.s4 1983009808
      %v1093 = vunpack.c.0.s8 %v1092
      %v1094 = vlaneseq
      %v1095 = vshrl.u32 %v1094, 7
      %v1096 = vsub.s32 %v1093, %v1095
      %v1097 = vrot.slane %v1083, %v1096
      %1098 = vrot.lane.b32.xlu0 %v1090, 90
      %v1099 = vpop.permute.xlu0 %1098
      %1100 = vrot.lane.b32.xlu0 %v1097, 90
      %v1101 = vpop.permute.xlu0 %1100
      %v1102 = vrot.slane %v1099, 4
      %v1103 = vrot.slane %v1101, 4
      %v1104 = vsel %vm382, %v1102, %v1103
      %v1105 = vsel %vm594, %v1099, %v1104
      %1108 = vst [vmem:[#allocation3 + $0x60] sm:$0x33] %v1105
      %1109 = vst.msk [vmem:[#allocation3 + $0x68] sm:$0x3] %vm357, %v1101
      %v1110 = vld [vmem:[#allocation3] sm:$0xff]
      %v1111 = vld [vmem:[#allocation3 + $0x8] sm:$0xf]
      %v1112 = vld [vmem:[#allocation3 + $0xc] sm:$0xff]
      %v1113 = vld [vmem:[#allocation3 + $0x14] sm:$0xf]
      %v1114 = vld [vmem:[#allocation3 + $0x18] sm:$0xff]
      %v1115 = vld [vmem:[#allocation3 + $0x20] sm:$0xf]
      %v1116 = vld [vmem:[#allocation3 + $0x24] sm:$0xff]
      %v1117 = vld [vmem:[#allocation3 + $0x2c] sm:$0xf]
      %v1118 = vld [vmem:[#allocation3 + $0x30] sm:$0xff]
      %v1119 = vld [vmem:[#allocation3 + $0x38] sm:$0xf]
      %v1120 = vld [vmem:[#allocation3 + $0x3c] sm:$0xff]
      %v1121 = vld [vmem:[#allocation3 + $0x44] sm:$0xf]
      %v1122 = vld [vmem:[#allocation3 + $0x48] sm:$0xff]
      %v1123 = vld [vmem:[#allocation3 + $0x50] sm:$0xf]
      %v1124 = vld [vmem:[#allocation3 + $0x54] sm:$0xff]
      %v1125 = vld [vmem:[#allocation3 + $0x5c] sm:$0xf]
      %v1126 = vld [vmem:[#allocation3 + $0x60] sm:$0xff]
      %v1127 = vld [vmem:[#allocation3 + $0x68] sm:$0xf]
      %v1146 = vunpack.c.l.b16 %v1110
      %v1147 = vunpack.c.h.b16 %v1110
      %v1148 = vunpack.c.l.b16 %v1111
      %v1149 = vunpack.c.l.b16 %v1112
      %v1150 = vunpack.c.h.b16 %v1112
      %v1151 = vunpack.c.l.b16 %v1113
      %v1152 = vunpack.c.l.b16 %v1114
      %v1153 = vunpack.c.h.b16 %v1114
      %v1154 = vunpack.c.l.b16 %v1115
      %v1155 = vunpack.c.l.b16 %v1116
      %v1156 = vunpack.c.h.b16 %v1116
      %v1157 = vunpack.c.l.b16 %v1117
      %v1158 = vunpack.c.l.b16 %v1118
      %v1159 = vunpack.c.h.b16 %v1118
      %v1160 = vunpack.c.l.b16 %v1119
      %v1161 = vunpack.c.l.b16 %v1120
      %v1162 = vunpack.c.h.b16 %v1120
      %v1163 = vunpack.c.l.b16 %v1121
      %v1164 = vunpack.c.l.b16 %v1122
      %v1165 = vunpack.c.h.b16 %v1122
      %v1166 = vunpack.c.l.b16 %v1123
      %v1167 = vunpack.c.l.b16 %v1124
      %v1168 = vunpack.c.h.b16 %v1124
      %v1169 = vunpack.c.l.b16 %v1125
      %v1170 = vunpack.c.l.b16 %v1126
      %v1171 = vunpack.c.h.b16 %v1126
      %v1172 = vunpack.c.l.b16 %v1127
      %v1173 = vpack.c.b16 %v1149, %v1146
      %v1174 = vpack.c.b16 %v1150, %v1147
      %v1175 = vpack.c.b16 %v1151, %v1148
      %v1176 = vpack.c.b16 %v1155, %v1152
      %v1177 = vpack.c.b16 %v1156, %v1153
      %v1178 = vpack.c.b16 %v1157, %v1154
      %v1179 = vpack.c.b16 %v1161, %v1158
      %v1180 = vpack.c.b16 %v1162, %v1159
      %v1181 = vpack.c.b16 %v1163, %v1160
      %v1182 = vpack.c.b16 %v1167, %v1164
      %v1183 = vpack.c.b16 %v1168, %v1165
      %v1184 = vpack.c.b16 %v1169, %v1166
      %v1185 = vpack.c.b16 %v1170, %v1170
      %v1186 = vpack.c.b16 %v1171, %v1171
      %v1187 = vpack.c.b16 %v1172, %v1172
      %v1201 = vsel %vm690, %v331, 0
      %v1204 = vsel %vm694, %v1185, 0
      %v1207 = vsel %vm694, %v1186, 0
      %v1210 = vsel %vm694, %v1187, 0
      %1212 = vmatprep.subr.bf16.mxu0 %v1174
      %1213 = vmatpush1.bf16.msra.mxu0 %v1173
      %1214 = vmatprep.subr.bf16.mxu0 %v1177
      %1215 = vmatpush1.bf16.msra.mxu0 %v1176
      %1216 = vmatprep.subr.bf16.mxu0 %v1180
      %1217 = vmatpush1.bf16.msra.mxu0 %v1179
      %1218 = vmatprep.subr.bf16.mxu0 %v1183
      %1219 = vmatpush1.bf16.msra.mxu0 %v1182
      %1220 = vmatprep.subr.bf16.mxu0 %v1207
      %1221 = vmatpush1.bf16.msra.mxu0 %v1204
      %1222 = vmatprep.subr.bf16.mxu0 0
      %1223 = vmatpush1.bf16.msra.mxu0 0
      %1224 = vmatprep.subr.bf16.mxu0 0
      %1225 = vmatpush1.bf16.msra.mxu0 0
      %1226 = vmatprep.subr.bf16.mxu0 0
      %1227 = vmatpush1.bf16.msra.mxu0 0
      %1228 = vmatprep.subr.bf16.mxu0 0
      %1229 = vmatpush1.bf16.msra.mxu0 0
      %1230 = vmatprep.subr.bf16.mxu0 0
      %1231 = vmatpush1.bf16.msra.mxu0 0
      %1232 = vmatprep.subr.bf16.mxu0 0
      %1233 = vmatpush1.bf16.msra.mxu0 0
      %1234 = vmatprep.subr.bf16.mxu0 0
      %1235 = vmatpush1.bf16.msra.mxu0 0
      %1236 = vmatprep.subr.bf16.mxu0 0
      %1237 = vmatpush1.bf16.msra.mxu0 0
      %1238 = vmatprep.subr.bf16.mxu0 0
      %1239 = vmatpush1.bf16.msra.mxu0 0
      %1240 = vmatprep.subr.bf16.mxu0 0
      %1241 = vmatpush1.bf16.msra.mxu0 0
      %1242 = vmatprep.subr.bf16.mxu0 0
      %1243 = vmatpush1.bf16.msra.mxu0 0
      %1244 = vmatprep.mubr.bf16.mxu0 0
      %1245 = vmatmul.mubr.bf16.gmra.mrb[0].mxu0 %v1201
      %v1246 = vpop.f32.mrb[0].mxu0
      %v1247 = vadd.f32 0.0, %v1246
      %v1248 = vpop.f32.mrb[0].mxu0
      %v1249 = vadd.f32 0.0, %v1248
      %v1250 = vpop.f32.mrb[0].mxu0
      %v1251 = vpop.f32.mrb[0].mxu0
      %1252 = vdwg.mxu0
      %1253 = vmatprep.subr.bf16.mxu0 0
      %1254 = vmatpush1.bf16.msra.mxu0 %v1175
      %1255 = vmatprep.subr.bf16.mxu0 0
      %1256 = vmatpush1.bf16.msra.mxu0 %v1178
      %1257 = vmatprep.subr.bf16.mxu0 0
      %1258 = vmatpush1.bf16.msra.mxu0 %v1181
      %1259 = vmatprep.subr.bf16.mxu0 0
      %1260 = vmatpush1.bf16.msra.mxu0 %v1184
      %1261 = vmatprep.subr.bf16.mxu0 0
      %1262 = vmatpush1.bf16.msra.mxu0 %v1210
      %1263 = vmatprep.subr.bf16.mxu0 0
      %1264 = vmatpush1.bf16.msra.mxu0 0
      %1265 = vmatprep.subr.bf16.mxu0 0
      %1266 = vmatpush1.bf16.msra.mxu0 0
      %1267 = vmatprep.subr.bf16.mxu0 0
      %1268 = vmatpush1.bf16.msra.mxu0 0
      %1269 = vmatprep.subr.bf16.mxu0 0
      %1270 = vmatpush1.bf16.msra.mxu0 0
      %1271 = vmatprep.subr.bf16.mxu0 0
      %1272 = vmatpush1.bf16.msra.mxu0 0
      %1273 = vmatprep.subr.bf16.mxu0 0
      %1274 = vmatpush1.bf16.msra.mxu0 0
      %1275 = vmatprep.subr.bf16.mxu0 0
      %1276 = vmatpush1.bf16.msra.mxu0 0
      %1277 = vmatprep.subr.bf16.mxu0 0
      %1278 = vmatpush1.bf16.msra.mxu0 0
      %1279 = vmatprep.subr.bf16.mxu0 0
      %1280 = vmatpush1.bf16.msra.mxu0 0
      %1281 = vmatprep.subr.bf16.mxu0 0
      %1282 = vmatpush1.bf16.msra.mxu0 0
      %1283 = vmatprep.subr.bf16.mxu0 0
      %1284 = vmatpush1.bf16.msra.mxu0 0
      %1285 = vmatprep.mubr.bf16.mxu0 0
      %1286 = vmatmul.mubr.bf16.gmra.mrb[0].mxu0 %v1201
      %v1287 = vpop.f32.mrb[0].mxu0
      %v1288 = vadd.f32 0.0, %v1287
      %v1289 = vpop.f32.mrb[0].mxu0
      %v1290 = vpop.f32.mrb[0].mxu0
      %v1291 = vpop.f32.mrb[0].mxu0
      %1292 = vdwg.mxu0
      %v1293 = vld [vmem:[%s300] sm:$0x3f]
      %v1294 = vunpack.c.l.bf16 %v1293
      %v1295 = vunpack.c.h.bf16 %v1293
      %1297 = vset.pattern.permute.xlu0 0
      %1298 = vperm.xlu0 %1297, %v334
      %v1299 = vpop.permute.xlu0 %1298
      %v1301 = vmul.f32 %v1247, %v1299
      %v1302 = vmul.f32 %v1249, %v1299
      %v1303 = vmul.f32 %v1288, %v1299
      %1305 = vset.pattern.permute.xlu0 0
      %1306 = vperm.xlu0 %1305, %v335
      %v1307 = vpop.permute.xlu0 %1306
      %v1309 = vadd.f32 %v1301, %v1307
      %v1310 = vadd.f32 %v1302, %v1307
      %v1311 = vadd.f32 %v1303, %v1307
      %v1314 = vcombine.high %v1294, %v1294
      %1315 = vrot.lane.b32.xlu0 %v1294, 109
      %v1316 = vpop.permute.xlu0 %1315
      %1317 = vrot.lane.b32.xlu0 %v1314, 109
      %v1318 = vpop.permute.xlu0 %1317
      %1319 = vrot.lane.b32.xlu0 %v1295, 109
      %v1320 = vpop.permute.xlu0 %1319
      %vm1321 = vcmask 891904
      %v1322 = vsel %vm1321, %v1316, %v1318
      %v1323 = vsel %vm1321, %v1318, %v1320
      %v1327 = vadd.f32 %v1309, %v1322
      %v1328 = vadd.f32 %v1310, %v1323
      %v1329 = vadd.f32 %v1311, %v1320
      %v1330 = vmax.f32 %v1327, 0.0
      %v1331 = vmax.f32 %v1328, 0.0
      %v1332 = vmax.f32 %v1329, 0.0
      %v1335 = vcombine.low %v1330, %v1331
      %1337 = vst [vmem:[%s305] sm:$0xff] %v1335
      %1338 = vst.msk [vmem:[%s305 + $0x8] sm:$0xf] %vm308, %v1332
      %p1339 = scmp.lt.s32.totalorder %s19, 1
      %s1340 = scalar_select %p1339, %s19, 1
      %s1341 = smul.addr %s1340, 3
      %s1342 = smul.addr %s1341, 4
      %s1343 = scalar_lea.vmem %s8, %s1342
      // Predicated region
      $region53: #{basic_block_forward.1} parent=51 // pred_check
        %p1344 = pneg %p210
      $region54: #{basic_block_forward.1} parent=51 // pred_check_branch
        %1346 = sbr.rel (%p1344) target = $region56
      $region55: #{basic_block_forward.1} parent=51 // pred_region
        _
      $region56: #{basic_block_forward.1} parent=51 // pred_fallthru
        _
    $region52: #{basic_block_forward.1} parent=5 // pred_fallthru
      _
    %p1347 = scmp.le.s32.totalorder 2, %s14
    // Predicated region
    $region57: #{basic_block_forward.1} parent=5 // pred_check
      %p1348 = pneg %p1347
    $region58: #{basic_block_forward.1} parent=5 // pred_check_branch
      %1350 = sbr.rel (%p1348) target = $region60
    $region59: #{basic_block_forward.1} parent=5 // pred_region
      %s1351 = ssub.s32 %s14, 2
      // Predicated region
      $region61: #{basic_block_forward.1} parent=59 // pred_check
        %p1352 = pneg %p216
      $region62: #{basic_block_forward.1} parent=59 // pred_check_branch
        %1354 = sbr.rel (%p1352) target = $region64
      $region63: #{basic_block_forward.1} parent=59 // pred_region
        %p1355 = scmp.lt.s32.totalorder %s20, 1
        %s1356 = scalar_select %p1355, %s20, 1
        %s1357 = smul.addr %s1356, 3
        %s1358 = smul.addr %s1357, 4
        %s1359 = scalar_lea.vmem %s8, %s1358
      $region64: #{basic_block_forward.1} parent=59 // pred_fallthru
        _
    $region60: #{basic_block_forward.1} parent=5 // pred_fallthru
      _
  $region6: #{basic_block_forward.1} parent=0 // loop_footer
    %s18 = sadd.s32 1, %s14
  $region7: #{basic_block_forward.1} parent=0 // loop_footer_branch
    %13 = sbr.rel target = $region3
  $region8: #{basic_block_forward.1} parent=0 // loop_exit
    _

</llo_original>
